<compile_context>
chip_gen: v6e
topology: v6e:2x2x1
jax: 0.10.0
libtpu: 0.0.40
codegen_flags: <defaults>
</compile_context>

<pallas_src>
import numpy as np
import jax
import jax.numpy as jnp
from jax import lax
from jax.experimental import pallas as pl
from jax.experimental.pallas import tpu as pltpu

# ----------------------------- model constants -----------------------------
EMBED = 32                        # embed_size
TABLES, TYPES, JOINS_EMB = 40, 30, 300
COLUMNS, OPS = 550, 10
BIN = 50                          # bin_number
MAX_F = 23                        # max_filters
MAX_F_PAD = 24                    # filter axis padded to a multiple of 8
SAMPLE = 1000
OP_E = EMBED // 8                 # 4
FDIM = EMBED + OP_E + 1           # 37 (filter hidden size)
FHIN = FDIM + BIN                 # 87  packed [col|op|val|hist] input width
FHID = FDIM + EMBED               # 69  packed [filter-out|hist-out] width
HID_PAD = 128                     # lane-padded hidden width for fused matmuls
CONCAT = EMBED * 4 + OP_E + 1 + EMBED + EMBED     # 197 (use_sample & use_hist)
CONCAT_PAD = 256                  # lane-dense fused projection width
FEAT_DIM = 1 + 1 + 3 * MAX_F + MAX_F + 1 + BIN * MAX_F + SAMPLE  # 2245
SLOPE = 0.01                      # F.leaky_relu default negative slope

# Reordered concat layout (segment starts aligned; filter|hist block starts at
# lane 128 so the shared reduction result is stored with ONE contiguous store).
OFF_TJT = 0                       # type|join|table   0:96
OFF_SAMP = 3 * EMBED              # sample            96:128
OFF_FH = 4 * EMBED                # filter|hist       128:197
OFF_PAD = OFF_FH + FHID           # 197

# Row permutation taking the original Wp input layout
# [type | filter | join | table | hist | sample] to the kernel layout
# [type | join | table | sample | filter | hist].
_WP_PERM = np.concatenate([
    np.arange(0, EMBED),                                            # type    0:32
    np.arange(EMBED + FDIM, EMBED + FDIM + EMBED),                  # join   69:101
    np.arange(EMBED + FDIM + EMBED, EMBED + FDIM + 2 * EMBED),      # table 101:133
    np.arange(EMBED + FDIM + 3 * EMBED, CONCAT),                    # sample 165:197
    np.arange(EMBED, EMBED + FDIM),                                 # filter 32:69
    np.arange(EMBED + FDIM + 2 * EMBED, EMBED + FDIM + 3 * EMBED),  # hist  133:165
])


def _leaky(x, slope=SLOPE):
    return jnp.where(x > 0, x, slope * x)


# ------------------------------- Pallas kernel ------------------------------
def _feature_embed_kernel(
    tjt_ref,                                # (TB, 96)     bf16 : [type|join|table]
    fh_ref,                                 # (TB*24, 87)  bf16 : [col|op|val|hist], masked rows zeroed
    samp_ref,                               # (TB, 1000)   bf16
    invnf_ref,                              # (TB, 1)      f32  : 1 / num_filters
    corr_ref,                               # (TB, 128)    f32  : removes masked/pad rows from the mean
    w1_ref, b1_ref,                         # (87, 128) bf16, (1, 128) f32 : blockdiag [Wf1 | Wh]
    w2_ref, b2_ref,                         # (128, 128) bf16, (1, 128) f32: blockdiag [Wf2 | I32]
    ws_ref, bs_ref,                         # (1000, 32) bf16, (1, 32) f32
    wp_ref, bp_ref,                         # (256, 197) bf16 (rows permuted), (1, 197) f32
    out_ref,                                # (TB, 197)    f32
    cat_ref,                                # scratch: (TB, 256) bf16
):
    f32, bf16 = jnp.float32, jnp.bfloat16
    tb = tjt_ref.shape[0]

    # leaky_relu only on the filter lanes (0:37); hist lanes pass through linearly
    filt_lane = lax.broadcasted_iota(jnp.int32, (1, HID_PAD), 1) < FDIM

    def leaky_filt(v):
        return jnp.where(jnp.logical_and(filt_lane, v < 0), SLOPE * v, v)

    # ---- fused filter-layer1 + hist Linear: ONE MXU pass over the tb*24 operand
    x = jnp.dot(fh_ref[...], w1_ref[...], preferred_element_type=f32) + b1_ref[...]
    x = leaky_filt(x)
    # ---- fused filter-layer2 + hist identity pass-through: second (last) pass
    y = jnp.dot(x.astype(bf16), w2_ref[...], preferred_element_type=f32) + b2_ref[...]
    y = leaky_filt(y)

    # masked mean over the 24 filter slots: plain group-sum (no per-row mask);
    # masked/pad rows are an exact constant that `corr` subtracts, then * 1/nf.
    red = jnp.sum(y.reshape(tb, MAX_F_PAD, HID_PAD), axis=1)        # (TB, 128)
    red = red * invnf_ref[...] + corr_ref[...]                      # [filt | hist | 0]

    # ---- sample path
    samp = jnp.dot(samp_ref[...], ws_ref[...], preferred_element_type=f32) + bs_ref[...]

    # ---- fused final projection: lane-dense (TB, 256) concat, one matmul
    cat_ref[:, OFF_TJT:OFF_TJT + 3 * EMBED] = tjt_ref[...]
    cat_ref[:, OFF_SAMP:OFF_SAMP + EMBED] = samp.astype(bf16)
    cat_ref[:, OFF_FH:OFF_FH + FHID] = red[:, :FHID].astype(bf16)
    # NOTE: pad lanes are re-zeroed every grid step (scratch is per-core/persistent).
    cat_ref[:, OFF_PAD:CONCAT_PAD] = jnp.zeros((tb, CONCAT_PAD - OFF_PAD), bf16)

    o = jnp.dot(cat_ref[...], wp_ref[...], preferred_element_type=f32) + bp_ref[...]
    out_ref[...] = jnp.where(o < 0, SLOPE * o, o)


# --------------------------------- wrapper ----------------------------------
def _pick_tb(B):
    """Generation-aware batch tile.

    v5e: cap 128 (16 MiB default scoped VMEM, lowest HBM BW).  v6e/v7x/unknown:
    cap 256 (per-step footprint ~6 MiB after operand packing).  Prefer >= 2 grid
    steps so v7x megacore uses both TensorCores and the DMA pipeline overlaps;
    tiny batches fall back to a single step.
    """
    try:
        kind = jax.devices()[0].device_kind.lower()
    except Exception:
        kind = ""
    cap = 128 if "v5" in kind else 256
    for c in (256, 128, 64, 32, 16, 8):
        if c <= cap and B % c == 0 and B // c >= 2:
            return c
    return B


def feature_embed(feature, p, *, tb=None):
    """Pallas implementation of FeatureEmbed.forward (use_hist=True, use_sample=True)."""
    B = feature.shape[0]
    f32, bf16 = jnp.float32, jnp.bfloat16
    if tb is None:
        tb = _pick_tb(B)
    assert B % tb == 0 and (tb == B or tb % 8 == 0)

    # ---- split the flat feature vector (glue) ----
    o = 0
    type_id = feature[:, o].astype(jnp.int32); o += 1
    join_id = feature[:, o].astype(jnp.int32); o += 1
    filters_id = feature[:, o:o + 3 * MAX_F]; o += 3 * MAX_F
    mask = feature[:, o:o + MAX_F]; o += MAX_F
    table_id = feature[:, o].astype(jnp.int32); o += 1
    hists = feature[:, o:o + BIN * MAX_F]; o += BIN * MAX_F
    sample = feature[:, o:o + SAMPLE]

    # ---- embedding gathers (glue; pure index lookups) - gather directly in bf16
    tjt = jnp.concatenate([
        p["typeEmbed"].astype(bf16)[type_id],
        p["joinEmbed"].astype(bf16)[join_id],
        p["tableEmbed"].astype(bf16)[table_id],
    ], axis=1)                                                       # (B, 96)

    # ---- packed per-filter operand: [col(32) | op(4) | val(1) | hist(50)]
    fexp = filters_id.reshape(B, 3, MAX_F).transpose(0, 2, 1)        # (B, 23, 3)
    col_emb = p["columnEmbed"].astype(bf16)[fexp[:, :, 0].astype(jnp.int32)]
    op_emb = p["opEmbed"].astype(bf16)[fexp[:, :, 1].astype(jnp.int32)]
    vals = fexp[:, :, 2:3].astype(bf16)
    hist = hists.astype(bf16).reshape(B, BIN, MAX_F).transpose(0, 2, 1)   # (B, 23, 50)
    fh = jnp.concatenate([col_emb, op_emb, vals, hist], axis=-1)          # (B, 23, 87)

    keep = mask != 0                                                 # (B, 23) bool
    fh = jnp.where(keep[:, :, None], fh, jnp.zeros((), bf16))        # exact-zero masked rows
    fh = jnp.pad(fh, ((0, 0), (0, MAX_F_PAD - MAX_F), (0, 0)))       # (B, 24, 87)
    fh = fh.reshape(B * MAX_F_PAD, FHIN)

    # per-batch scalars: 1/nf (reference divisor) and zero-row count (incl. pad row)
    # NOTE: nf == 0 gives inf/NaN, matching the reference / torch behaviour.
    nf = jnp.sum(mask, axis=1, keepdims=True).astype(f32)            # (B, 1)
    invnf = 1.0 / nf
    n_zero = MAX_F_PAD - jnp.sum(keep.astype(f32), axis=1, keepdims=True)

    # ---- block-diagonal fused weights (tiny, built once per call) ----
    w1 = (jnp.zeros((FHIN, HID_PAD), f32)
          .at[:FDIM, :FDIM].set(p["Wf1"])
          .at[FDIM:FHIN, FDIM:FHID].set(p["Wh"]))
    b1 = (jnp.zeros((1, HID_PAD), f32)
          .at[:, :FDIM].set(p["bf1"])
          .at[:, FDIM:FHID].set(p["bh"]))
    w2 = (jnp.zeros((HID_PAD, HID_PAD), f32)
          .at[:FDIM, :FDIM].set(p["Wf2"])
          .at[FDIM:FHID, FDIM:FHID].set(jnp.eye(EMBED, dtype=f32)))
    b2 = jnp.zeros((1, HID_PAD), f32).at[:, :FDIM].set(p["bf2"])
    w1b, w2b = w1.astype(bf16), w2.astype(bf16)

    # constant output of an all-zero (masked / pad) filter row through the SAME
    # bf16 path the kernel uses -> per-batch correction removes those rows.
    lane = jnp.asarray((np.arange(HID_PAD) < FDIM)[None, :])
    lfilt = lambda v: jnp.where(jnp.logical_and(lane, v < 0), SLOPE * v, v)
    c1 = lfilt(b1)
    c2 = lfilt(jnp.dot(c1.astype(bf16).astype(f32), w2b.astype(f32)) + b2)  # (1, 128)
    corr = -(n_zero * invnf) * c2                                            # (B, 128)

    # final projection weight: rows permuted to the kernel concat layout, zero-padded
    wp = (jnp.zeros((CONCAT_PAD, CONCAT), f32)
          .at[:CONCAT, :].set(p["Wp"][_WP_PERM, :])).astype(bf16)

    full = lambda shp: pl.BlockSpec(shp, lambda i: (0,) * len(shp))

    out = pl.pallas_call(
        _feature_embed_kernel,
        out_shape=jax.ShapeDtypeStruct((B, CONCAT), f32),
        grid=(B // tb,),
        in_specs=[
            pl.BlockSpec((tb, 3 * EMBED), lambda i: (i, 0)),              # tjt
            pl.BlockSpec((tb * MAX_F_PAD, FHIN), lambda i: (i, 0)),       # fh
            pl.BlockSpec((tb, SAMPLE), lambda i: (i, 0)),                 # sample
            pl.BlockSpec((tb, 1), lambda i: (i, 0)),                      # invnf
            pl.BlockSpec((tb, HID_PAD), lambda i: (i, 0)),                # corr
            full((FHIN, HID_PAD)), full((1, HID_PAD)),                    # W1, b1
            full((HID_PAD, HID_PAD)), full((1, HID_PAD)),                 # W2, b2
            full((SAMPLE, EMBED)), full((1, EMBED)),                      # Ws, bs
            full((CONCAT_PAD, CONCAT)), full((1, CONCAT)),                # Wp, bp
        ],
        out_specs=pl.BlockSpec((tb, CONCAT), lambda i: (i, 0)),
        scratch_shapes=[pltpu.VMEM((tb, CONCAT_PAD), bf16)],
        compiler_params=pltpu.CompilerParams(dimension_semantics=("parallel",)),
    )(
        tjt, fh, sample.astype(bf16), invnf, corr,
        w1b, b1, w2b, b2,
        p["Ws"].astype(bf16), p["bs"], wp, p["bp"],
    )
    return out


# ------------------------- pure-JAX reference (check) ------------------------
def reference_forward(feature, p):
    B = feature.shape[0]
    o = 0
    type_id = feature[:, o:o + 1].astype(jnp.int32); o += 1
    join_id = feature[:, o:o + 1].astype(jnp.int32); o += 1
    filters_id = feature[:, o:o + 3 * MAX_F]; o += 3 * MAX_F
    mask = feature[:, o:o + MAX_F]; o += MAX_F
    table_id = feature[:, o:o + 1].astype(jnp.int32); o += 1
    hists = feature[:, o:o + BIN * MAX_F]; o += BIN * MAX_F
    sample = feature[:, o:o + SAMPLE]

    type_e = p["typeEmbed"][type_id[:, 0]]
    join_e = p["joinEmbed"][join_id[:, 0]]
    table_e = p["tableEmbed"][table_id[:, 0]]

    fexp = filters_id.reshape(B, 3, MAX_F).transpose(0, 2, 1)
    col = p["columnEmbed"][fexp[:, :, 0].astype(jnp.int32)]
    op = p["opEmbed"][fexp[:, :, 1].astype(jnp.int32)]
    vals = fexp[:, :, 2:3]
    cc = jnp.concatenate([col, op, vals], axis=-1)
    cc = _leaky(cc @ p["Wf1"] + p["bf1"])
    cc = _leaky(cc @ p["Wf2"] + p["bf2"])
    keep = (mask != 0)[:, :, None]
    cc = jnp.where(keep, cc, 0.0)
    nf = mask.sum(axis=1, keepdims=True)
    filt = cc.sum(axis=1) / nf

    he = hists.reshape(B, BIN, MAX_F).transpose(0, 2, 1)
    hm = he @ p["Wh"] + p["bh"]
    hm = jnp.where(keep, hm, 0.0)
    hist_e = hm.sum(axis=1) / nf

    samp_e = sample @ p["Ws"] + p["bs"]

    final = jnp.concatenate([type_e, filt, join_e, table_e, hist_e, samp_e], axis=1)
    return _leaky(final @ p["Wp"] + p["bp"])


# ----------------------------------- main ------------------------------------
if __name__ == "__main__":
    B = 8

    # deterministic synthetic parameters
    pkeys = jax.random.split(jax.random.PRNGKey(0), 16)
    rnd = lambda k, shp, s=0.05: (s * jax.random.normal(k, shp)).astype(jnp.float32)
    params = {
        "typeEmbed": rnd(pkeys[0], (TYPES, EMBED)),
        "tableEmbed": rnd(pkeys[1], (TABLES, EMBED)),
        "columnEmbed": rnd(pkeys[2], (COLUMNS, EMBED)),
        "opEmbed": rnd(pkeys[3], (OPS, OP_E)),
        "joinEmbed": rnd(pkeys[4], (JOINS_EMB, EMBED)),
        "Wf1": rnd(pkeys[5], (FDIM, FDIM)), "bf1": rnd(pkeys[6], (1, FDIM)),
        "Wf2": rnd(pkeys[7], (FDIM, FDIM)), "bf2": rnd(pkeys[8], (1, FDIM)),
        "Wh": rnd(pkeys[9], (BIN, EMBED)), "bh": rnd(pkeys[10], (1, EMBED)),
        "Ws": rnd(pkeys[11], (SAMPLE, EMBED)), "bs": rnd(pkeys[12], (1, EMBED)),
        "Wp": rnd(pkeys[13], (CONCAT, CONCAT)), "bp": rnd(pkeys[14], (1, CONCAT)),
    }
    # TODO(synk): linearType / linearJoin exist in __init__ but are unused in forward; omitted.

    # deterministic synthetic input feature vector (B, 2245)
    ikeys = jax.random.split(jax.random.PRNGKey(1), 9)
    f32 = jnp.float32
    type_id = jax.random.randint(ikeys[0], (B, 1), 0, TYPES).astype(f32)
    join_id = jax.random.randint(ikeys[1], (B, 1), 0, JOINS_EMB).astype(f32)
    cols_id = jax.random.randint(ikeys[2], (B, MAX_F), 0, COLUMNS).astype(f32)
    ops_id = jax.random.randint(ikeys[3], (B, MAX_F), 0, OPS).astype(f32)
    vals = jax.random.uniform(ikeys[4], (B, MAX_F), dtype=f32)
    filters_id = jnp.concatenate([cols_id, ops_id, vals], axis=1)        # (B, 69)
    n_active = jax.random.randint(ikeys[5], (B,), 1, MAX_F + 1)
    mask = (jnp.arange(MAX_F)[None, :] < n_active[:, None]).astype(f32)  # (B, 23)
    table_id = jax.random.randint(ikeys[6], (B, 1), 0, TABLES).astype(f32)
    hists = jax.random.uniform(ikeys[7], (B, BIN * MAX_F), dtype=f32)
    sample = jax.random.uniform(ikeys[8], (B, SAMPLE), dtype=f32)

    feature = jnp.concatenate(
        [type_id, join_id, filters_id, mask, table_id, hists, sample], axis=1)
    assert feature.shape == (B, FEAT_DIM)

    out = jax.jit(feature_embed)(feature, params)
    out = jax.block_until_ready(out)

    ref = jax.block_until_ready(reference_forward(feature, params))
    assert out.shape == (B, CONCAT)
    np.testing.assert_allclose(np.asarray(out), np.asarray(ref), rtol=1e-2, atol=1e-2)

    print("KERNEL_OK")
</pallas_src>

<mosaic_0001>
module attributes {stable_mosaic.version = 11 : i64} {
  func.func @_feature_embed_kernel(%arg0: i32, %arg1: memref<8x96xbf16, #tpu.memory_space<vmem>>, %arg2: memref<192x87xbf16, #tpu.memory_space<vmem>>, %arg3: memref<8x1000xbf16, #tpu.memory_space<vmem>>, %arg4: memref<8x1xf32, #tpu.memory_space<vmem>>, %arg5: memref<8x128xf32, #tpu.memory_space<vmem>>, %arg6: memref<87x128xbf16, #tpu.memory_space<vmem>>, %arg7: memref<1x128xf32, #tpu.memory_space<vmem>>, %arg8: memref<128x128xbf16, #tpu.memory_space<vmem>>, %arg9: memref<1x128xf32, #tpu.memory_space<vmem>>, %arg10: memref<1000x32xbf16, #tpu.memory_space<vmem>>, %arg11: memref<1x32xf32, #tpu.memory_space<vmem>>, %arg12: memref<256x197xbf16, #tpu.memory_space<vmem>>, %arg13: memref<1x197xf32, #tpu.memory_space<vmem>>, %arg14: memref<8x197xf32, #tpu.memory_space<vmem>>, %arg15: memref<8x256xbf16, #tpu.memory_space<vmem>>) attributes {dimension_semantics = [#tpu.dimension_semantics<parallel>], iteration_bounds = array<i64: 1>, scalar_prefetch = 0 : i64, scratch_operands = 1 : i64, tpu.core_type = #tpu.core_type<tc>, window_params = [{transform_indices = @transform_0, window_bounds = array<i64: 8, 96>}, {transform_indices = @transform_1, window_bounds = array<i64: 192, 87>}, {transform_indices = @transform_2, window_bounds = array<i64: 8, 1000>}, {transform_indices = @transform_3, window_bounds = array<i64: 8, 1>}, {transform_indices = @transform_4, window_bounds = array<i64: 8, 128>}, {pipeline_mode = #tpu.pipeline_mode<synchronous>, transform_indices = @transform_5, window_bounds = array<i64: 87, 128>}, {pipeline_mode = #tpu.pipeline_mode<synchronous>, transform_indices = @transform_6, window_bounds = array<i64: 1, 128>}, {pipeline_mode = #tpu.pipeline_mode<synchronous>, transform_indices = @transform_7, window_bounds = array<i64: 128, 128>}, {pipeline_mode = #tpu.pipeline_mode<synchronous>, transform_indices = @transform_8, window_bounds = array<i64: 1, 128>}, {pipeline_mode = #tpu.pipeline_mode<synchronous>, transform_indices = @transform_9, window_bounds = array<i64: 1000, 32>}, {pipeline_mode = #tpu.pipeline_mode<synchronous>, transform_indices = @transform_10, window_bounds = array<i64: 1, 32>}, {pipeline_mode = #tpu.pipeline_mode<synchronous>, transform_indices = @transform_11, window_bounds = array<i64: 256, 197>}, {pipeline_mode = #tpu.pipeline_mode<synchronous>, transform_indices = @transform_12, window_bounds = array<i64: 1, 197>}, {transform_indices = @transform_13, window_bounds = array<i64: 8, 197>}]} {
    %0 = tpu.iota {dimensions = array<i32: 1>} : vector<1x128xi32>
    %c37_i32 = arith.constant 37 : i32
    %1 = vector.broadcast %c37_i32 : i32 to vector<1x128xi32>
    %2 = arith.cmpi slt, %0, %1 : vector<1x128xi32>
    %c0 = arith.constant 0 : index
    %c0_0 = arith.constant 0 : index
    %3 = vector.load %arg2[%c0, %c0_0] : memref<192x87xbf16, #tpu.memory_space<vmem>>, vector<192x87xbf16>
    %c0_1 = arith.constant 0 : index
    %c0_2 = arith.constant 0 : index
    %4 = vector.load %arg6[%c0_1, %c0_2] : memref<87x128xbf16, #tpu.memory_space<vmem>>, vector<87x128xbf16>
    %cst = arith.constant dense<0.000000e+00> : vector<192x128xf32>
    %5 = tpu.matmul %3, %4, %cst {dimension_numbers = #tpu.dot_dimension_numbers<[1], [0], [0], [1], [0, 0, 1, 1], [], []>} : vector<192x87xbf16>, vector<87x128xbf16>, vector<192x128xf32> -> vector<192x128xf32>
    %c0_3 = arith.constant 0 : index
    %c0_4 = arith.constant 0 : index
    %6 = vector.load %arg7[%c0_3, %c0_4] : memref<1x128xf32, #tpu.memory_space<vmem>>, vector<1x128xf32>
    %7 = vector.broadcast %6 : vector<1x128xf32> to vector<192x128xf32>
    %8 = arith.addf %5, %7 : vector<192x128xf32>
    %cst_5 = arith.constant 0.000000e+00 : f32
    %9 = vector.broadcast %cst_5 : f32 to vector<192x128xf32>
    %10 = arith.cmpf olt, %8, %9 : vector<192x128xf32>
    %11 = vector.broadcast %2 : vector<1x128xi1> to vector<192x128xi1>
    %12 = arith.andi %11, %10 : vector<192x128xi1>
    %cst_6 = arith.constant 0.00999999977 : f32
    %13 = vector.broadcast %cst_6 : f32 to vector<192x128xf32>
    %14 = arith.mulf %13, %8 : vector<192x128xf32>
    %15 = arith.select %12, %14, %8 : vector<192x128xi1>, vector<192x128xf32>
    %16 = arith.truncf %15 : vector<192x128xf32> to vector<192x128xbf16>
    %c0_7 = arith.constant 0 : index
    %c0_8 = arith.constant 0 : index
    %17 = vector.load %arg8[%c0_7, %c0_8] : memref<128x128xbf16, #tpu.memory_space<vmem>>, vector<128x128xbf16>
    %cst_9 = arith.constant dense<0.000000e+00> : vector<192x128xf32>
    %18 = tpu.matmul %16, %17, %cst_9 {dimension_numbers = #tpu.dot_dimension_numbers<[1], [0], [0], [1], [0, 0, 1, 1], [], []>} : vector<192x128xbf16>, vector<128x128xbf16>, vector<192x128xf32> -> vector<192x128xf32>
    %c0_10 = arith.constant 0 : index
    %c0_11 = arith.constant 0 : index
    %19 = vector.load %arg9[%c0_10, %c0_11] : memref<1x128xf32, #tpu.memory_space<vmem>>, vector<1x128xf32>
    %20 = vector.broadcast %19 : vector<1x128xf32> to vector<192x128xf32>
    %21 = arith.addf %18, %20 : vector<192x128xf32>
    %cst_12 = arith.constant 0.000000e+00 : f32
    %22 = vector.broadcast %cst_12 : f32 to vector<192x128xf32>
    %23 = arith.cmpf olt, %21, %22 : vector<192x128xf32>
    %24 = vector.broadcast %2 : vector<1x128xi1> to vector<192x128xi1>
    %25 = arith.andi %24, %23 : vector<192x128xi1>
    %cst_13 = arith.constant 0.00999999977 : f32
    %26 = vector.broadcast %cst_13 : f32 to vector<192x128xf32>
    %27 = arith.mulf %26, %21 : vector<192x128xf32>
    %28 = arith.select %25, %27, %21 : vector<192x128xi1>, vector<192x128xf32>
    %29 = vector.shape_cast %28 : vector<192x128xf32> to vector<8x24x128xf32>
    %cst_14 = arith.constant dense<0.000000e+00> : vector<8x128xf32>
    %30 = vector.multi_reduction <add>, %29, %cst_14 [1] : vector<8x24x128xf32> to vector<8x128xf32>
    %c0_15 = arith.constant 0 : index
    %c0_16 = arith.constant 0 : index
    %31 = vector.load %arg4[%c0_15, %c0_16] : memref<8x1xf32, #tpu.memory_space<vmem>>, vector<8x1xf32>
    %32 = vector.broadcast %31 : vector<8x1xf32> to vector<8x128xf32>
    %33 = arith.mulf %30, %32 : vector<8x128xf32>
    %c0_17 = arith.constant 0 : index
    %c0_18 = arith.constant 0 : index
    %34 = vector.load %arg5[%c0_17, %c0_18] : memref<8x128xf32, #tpu.memory_space<vmem>>, vector<8x128xf32>
    %35 = arith.addf %33, %34 : vector<8x128xf32>
    %c0_19 = arith.constant 0 : index
    %c0_20 = arith.constant 0 : index
    %36 = vector.load %arg3[%c0_19, %c0_20] : memref<8x1000xbf16, #tpu.memory_space<vmem>>, vector<8x1000xbf16>
    %c0_21 = arith.constant 0 : index
    %c0_22 = arith.constant 0 : index
    %37 = vector.load %arg10[%c0_21, %c0_22] : memref<1000x32xbf16, #tpu.memory_space<vmem>>, vector<1000x32xbf16>
    %cst_23 = arith.constant dense<0.000000e+00> : vector<8x32xf32>
    %38 = tpu.matmul %36, %37, %cst_23 {dimension_numbers = #tpu.dot_dimension_numbers<[1], [0], [0], [1], [0, 0, 1, 1], [], []>} : vector<8x1000xbf16>, vector<1000x32xbf16>, vector<8x32xf32> -> vector<8x32xf32>
    %c0_24 = arith.constant 0 : index
    %c0_25 = arith.constant 0 : index
    %39 = vector.load %arg11[%c0_24, %c0_25] : memref<1x32xf32, #tpu.memory_space<vmem>>, vector<1x32xf32>
    %40 = vector.broadcast %39 : vector<1x32xf32> to vector<8x32xf32>
    %41 = arith.addf %38, %40 : vector<8x32xf32>
    %c0_26 = arith.constant 0 : index
    %c0_27 = arith.constant 0 : index
    %42 = vector.load %arg1[%c0_26, %c0_27] : memref<8x96xbf16, #tpu.memory_space<vmem>>, vector<8x96xbf16>
    %c0_28 = arith.constant 0 : index
    %c0_29 = arith.constant 0 : index
    %43 = vector.load %arg15[%c0_28, %c0_29] : memref<8x256xbf16, #tpu.memory_space<vmem>>, vector<8x96xbf16>
    tpu.vector_store %arg15[%c0_28, %c0_29], %42 {strides = array<i32>} : memref<8x256xbf16, #tpu.memory_space<vmem>>, vector<8x96xbf16>,
    %44 = arith.truncf %41 : vector<8x32xf32> to vector<8x32xbf16>
    %c0_30 = arith.constant 0 : index
    %c96 = arith.constant 96 : index
    %45 = vector.load %arg15[%c0_30, %c96] : memref<8x256xbf16, #tpu.memory_space<vmem>>, vector<8x32xbf16>
    tpu.vector_store %arg15[%c0_30, %c96], %44 {strides = array<i32>} : memref<8x256xbf16, #tpu.memory_space<vmem>>, vector<8x32xbf16>,
    %46 = vector.extract_strided_slice %35 {offsets = [0, 0], sizes = [8, 69], strides = [1, 1]} : vector<8x128xf32> to vector<8x69xf32>
    %47 = arith.truncf %46 : vector<8x69xf32> to vector<8x69xbf16>
    %c0_31 = arith.constant 0 : index
    %c128 = arith.constant 128 : index
    %48 = vector.load %arg15[%c0_31, %c128] : memref<8x256xbf16, #tpu.memory_space<vmem>>, vector<8x69xbf16>
    tpu.vector_store %arg15[%c0_31, %c128], %47 {strides = array<i32>} : memref<8x256xbf16, #tpu.memory_space<vmem>>, vector<8x69xbf16>,
    %cst_32 = arith.constant 0.000000e+00 : bf16
    %49 = vector.broadcast %cst_32 : bf16 to vector<8x59xbf16>
    %c0_33 = arith.constant 0 : index
    %c197 = arith.constant 197 : index
    %50 = vector.load %arg15[%c0_33, %c197] : memref<8x256xbf16, #tpu.memory_space<vmem>>, vector<8x59xbf16>
    tpu.vector_store %arg15[%c0_33, %c197], %49 {strides = array<i32>} : memref<8x256xbf16, #tpu.memory_space<vmem>>, vector<8x59xbf16>,
    %c0_34 = arith.constant 0 : index
    %c0_35 = arith.constant 0 : index
    %51 = vector.load %arg15[%c0_34, %c0_35] : memref<8x256xbf16, #tpu.memory_space<vmem>>, vector<8x256xbf16>
    %c0_36 = arith.constant 0 : index
    %c0_37 = arith.constant 0 : index
    %52 = vector.load %arg12[%c0_36, %c0_37] : memref<256x197xbf16, #tpu.memory_space<vmem>>, vector<256x197xbf16>
    %cst_38 = arith.constant dense<0.000000e+00> : vector<8x197xf32>
    %53 = tpu.matmul %51, %52, %cst_38 {dimension_numbers = #tpu.dot_dimension_numbers<[1], [0], [0], [1], [0, 0, 1, 1], [], []>} : vector<8x256xbf16>, vector<256x197xbf16>, vector<8x197xf32> -> vector<8x197xf32>
    %c0_39 = arith.constant 0 : index
    %c0_40 = arith.constant 0 : index
    %54 = vector.load %arg13[%c0_39, %c0_40] : memref<1x197xf32, #tpu.memory_space<vmem>>, vector<1x197xf32>
    %55 = vector.broadcast %54 : vector<1x197xf32> to vector<8x197xf32>
    %56 = arith.addf %53, %55 : vector<8x197xf32>
    %cst_41 = arith.constant 0.000000e+00 : f32
    %57 = vector.broadcast %cst_41 : f32 to vector<8x197xf32>
    %58 = arith.cmpf olt, %56, %57 : vector<8x197xf32>
    %cst_42 = arith.constant 0.00999999977 : f32
    %59 = vector.broadcast %cst_42 : f32 to vector<8x197xf32>
    %60 = arith.mulf %59, %56 : vector<8x197xf32>
    %61 = arith.select %58, %60, %56 : vector<8x197xi1>, vector<8x197xf32>
    %c0_43 = arith.constant 0 : index
    %c0_44 = arith.constant 0 : index
    %62 = vector.load %arg14[%c0_43, %c0_44] : memref<8x197xf32, #tpu.memory_space<vmem>>, vector<8x197xf32>
    tpu.vector_store %arg14[%c0_43, %c0_44], %61 {strides = array<i32>} : memref<8x197xf32, #tpu.memory_space<vmem>>, vector<8x197xf32>,
    return
  }
  func.func @transform_0(%arg0: i32) -> (i32, i32) {
    %c0_i32 = arith.constant 0 : i32
    %c0_i32_0 = arith.constant 0 : i32
    return %arg0, %c0_i32 : i32, i32
  }
  func.func @transform_1(%arg0: i32) -> (i32, i32) {
    %c0_i32 = arith.constant 0 : i32
    %c0_i32_0 = arith.constant 0 : i32
    return %arg0, %c0_i32 : i32, i32
  }
  func.func @transform_2(%arg0: i32) -> (i32, i32) {
    %c0_i32 = arith.constant 0 : i32
    %c0_i32_0 = arith.constant 0 : i32
    return %arg0, %c0_i32 : i32, i32
  }
  func.func @transform_3(%arg0: i32) -> (i32, i32) {
    %c0_i32 = arith.constant 0 : i32
    %c0_i32_0 = arith.constant 0 : i32
    return %arg0, %c0_i32 : i32, i32
  }
  func.func @transform_4(%arg0: i32) -> (i32, i32) {
    %c0_i32 = arith.constant 0 : i32
    %c0_i32_0 = arith.constant 0 : i32
    return %arg0, %c0_i32 : i32, i32
  }
  func.func @transform_5(%arg0: i32) -> (i32, i32) {
    %c0_i32 = arith.constant 0 : i32
    %c0_i32_0 = arith.constant 0 : i32
    %c0_i32_1 = arith.constant 0 : i32
    return %c0_i32, %c0_i32_0 : i32, i32
  }
  func.func @transform_6(%arg0: i32) -> (i32, i32) {
    %c0_i32 = arith.constant 0 : i32
    %c0_i32_0 = arith.constant 0 : i32
    %c0_i32_1 = arith.constant 0 : i32
    return %c0_i32, %c0_i32_0 : i32, i32
  }
  func.func @transform_7(%arg0: i32) -> (i32, i32) {
    %c0_i32 = arith.constant 0 : i32
    %c0_i32_0 = arith.constant 0 : i32
    %c0_i32_1 = arith.constant 0 : i32
    return %c0_i32, %c0_i32_0 : i32, i32
  }
  func.func @transform_8(%arg0: i32) -> (i32, i32) {
    %c0_i32 = arith.constant 0 : i32
    %c0_i32_0 = arith.constant 0 : i32
    %c0_i32_1 = arith.constant 0 : i32
    return %c0_i32, %c0_i32_0 : i32, i32
  }
  func.func @transform_9(%arg0: i32) -> (i32, i32) {
    %c0_i32 = arith.constant 0 : i32
    %c0_i32_0 = arith.constant 0 : i32
    %c0_i32_1 = arith.constant 0 : i32
    return %c0_i32, %c0_i32_0 : i32, i32
  }
  func.func @transform_10(%arg0: i32) -> (i32, i32) {
    %c0_i32 = arith.constant 0 : i32
    %c0_i32_0 = arith.constant 0 : i32
    %c0_i32_1 = arith.constant 0 : i32
    return %c0_i32, %c0_i32_0 : i32, i32
  }
  func.func @transform_11(%arg0: i32) -> (i32, i32) {
    %c0_i32 = arith.constant 0 : i32
    %c0_i32_0 = arith.constant 0 : i32
    %c0_i32_1 = arith.constant 0 : i32
    return %c0_i32, %c0_i32_0 : i32, i32
  }
  func.func @transform_12(%arg0: i32) -> (i32, i32) {
    %c0_i32 = arith.constant 0 : i32
    %c0_i32_0 = arith.constant 0 : i32
    %c0_i32_1 = arith.constant 0 : i32
    return %c0_i32, %c0_i32_0 : i32, i32
  }
  func.func @transform_13(%arg0: i32) -> (i32, i32) {
    %c0_i32 = arith.constant 0 : i32
    %c0_i32_0 = arith.constant 0 : i32
    return %arg0, %c0_i32 : i32, i32
  }
}

</mosaic_0001>

<llo_original>
// kernel: feature_embed.1
$region0: #{feature_embed.1}
  #allocation0 [shape = 'u32[]', space=smem, size = 0x4, offset = 0x4, fixed_abs, tag = 'smem constant byte address 0x4 - core index']
  #allocation1 [shape = 'u32[144,128]{1,0:T(1,128)}', space=vmem, size = 0x12000, scoped, tag = 'internal scratch']
  #allocation2 [shape = 'bf16[8,256]{1,0:T(8,128)(2,1)}', space=vmem, size = 0x1000, scoped, tag = 'scratch operand']
  %s0 = inlined_call_operand.vmem [shape: bf16[8,96], index: 0, kind: input, shape index: {}]
  %s1 = inlined_call_operand.vmem [shape: bf16[192,87], index: 1, kind: input, shape index: {}]
  %s2 = inlined_call_operand.vmem [shape: bf16[8,1000], index: 2, kind: input, shape index: {}]
  %s3 = inlined_call_operand.vmem [shape: f32[8,1], index: 3, kind: input, shape index: {}]
  %s4 = inlined_call_operand.vmem [shape: f32[8,128], index: 4, kind: input, shape index: {}]
  %s5 = inlined_call_operand.vmem [shape: bf16[87,128], index: 5, kind: input, shape index: {}]
  %s6 = inlined_call_operand.vmem [shape: f32[1,128], index: 6, kind: input, shape index: {}]
  %s7 = inlined_call_operand.vmem [shape: bf16[128,128], index: 7, kind: input, shape index: {}]
  %s8 = inlined_call_operand.vmem [shape: f32[1,128], index: 8, kind: input, shape index: {}]
  %s9 = inlined_call_operand.vmem [shape: bf16[1000,32], index: 9, kind: input, shape index: {}]
  %s10 = inlined_call_operand.vmem [shape: f32[1,32], index: 10, kind: input, shape index: {}]
  %s11 = inlined_call_operand.vmem [shape: bf16[256,197], index: 11, kind: input, shape index: {}]
  %s12 = inlined_call_operand.vmem [shape: f32[1,197], index: 12, kind: input, shape index: {}]
  %s13 = inlined_call_operand.hbm [shape: f32[8,197], index: 13, kind: output, shape index: {}]
  %s14 = sld [smem:[#allocation0]]
  $region62: #{feature_embed.1} parent=0
    _
  %s16 = ssub.s32 1, %s14
  %s17 = scalar_select 0, %s16, %s14
  $region1: #{feature_embed.1} parent=0
    #allocation3 [shape = 'u8[8192]{0}', space=vmem, size = 0x2000, scoped, tag = 'output window, operand 0, single buffered']
    #allocation4 [shape = 's32[1]{0}', space=sflag, size = 0x4, scoped, tag = 'scoped memory for feature_embed.1']
    %18 = vsyncpa [#allocation4], 0
    // Predicated region
    $region2: #{feature_embed.1} parent=1 // pred_check
      _
    $region3: #{feature_embed.1} parent=1 // pred_check_branch
      %20 = sbr.rel (0) target = $region5
    $region4: #{feature_embed.1} parent=1 // pred_region
      _
    $region5: #{feature_embed.1} parent=1 // pred_fallthru
      _
    // Predicated region
    $region6: #{feature_embed.1} parent=1 // pred_check
      _
    $region7: #{feature_embed.1} parent=1 // pred_check_branch
      %22 = sbr.rel (0) target = $region9
    $region8: #{feature_embed.1} parent=1 // pred_region
      _
    $region9: #{feature_embed.1} parent=1 // pred_fallthru
      _
    // Predicated region
    $region10: #{feature_embed.1} parent=1 // pred_check
      _
    $region11: #{feature_embed.1} parent=1 // pred_check_branch
      %24 = sbr.rel (0) target = $region13
    $region12: #{feature_embed.1} parent=1 // pred_region
      _
    $region13: #{feature_embed.1} parent=1 // pred_fallthru
      _
    // Predicated region
    $region14: #{feature_embed.1} parent=1 // pred_check
      _
    $region15: #{feature_embed.1} parent=1 // pred_check_branch
      %26 = sbr.rel (0) target = $region17
    $region16: #{feature_embed.1} parent=1 // pred_region
      _
    $region17: #{feature_embed.1} parent=1 // pred_fallthru
      _
    // Predicated region
    $region18: #{feature_embed.1} parent=1 // pred_check
      _
    $region19: #{feature_embed.1} parent=1 // pred_check_branch
      %28 = sbr.rel (0) target = $region21
    $region20: #{feature_embed.1} parent=1 // pred_region
      _
    $region21: #{feature_embed.1} parent=1 // pred_fallthru
      _
    // Predicated region
    $region22: #{feature_embed.1} parent=1 // pred_check
      _
    $region23: #{feature_embed.1} parent=1 // pred_check_branch
      %30 = sbr.rel (0) target = $region25
    $region24: #{feature_embed.1} parent=1 // pred_region
      _
    $region25: #{feature_embed.1} parent=1 // pred_fallthru
      _
    // Predicated region
    $region26: #{feature_embed.1} parent=1 // pred_check
      _
    $region27: #{feature_embed.1} parent=1 // pred_check_branch
      %32 = sbr.rel (0) target = $region29
    $region28: #{feature_embed.1} parent=1 // pred_region
      _
    $region29: #{feature_embed.1} parent=1 // pred_fallthru
      _
    // Predicated region
    $region30: #{feature_embed.1} parent=1 // pred_check
      _
    $region31: #{feature_embed.1} parent=1 // pred_check_branch
      %34 = sbr.rel (0) target = $region33
    $region32: #{feature_embed.1} parent=1 // pred_region
      _
    $region33: #{feature_embed.1} parent=1 // pred_fallthru
      _
    // Predicated region
    $region34: #{feature_embed.1} parent=1 // pred_check
      _
    $region35: #{feature_embed.1} parent=1 // pred_check_branch
      %36 = sbr.rel (0) target = $region37
    $region36: #{feature_embed.1} parent=1 // pred_region
      _
    $region37: #{feature_embed.1} parent=1 // pred_fallthru
      _
    // Predicated region
    $region38: #{feature_embed.1} parent=1 // pred_check
      _
    $region39: #{feature_embed.1} parent=1 // pred_check_branch
      %38 = sbr.rel (0) target = $region41
    $region40: #{feature_embed.1} parent=1 // pred_region
      _
    $region41: #{feature_embed.1} parent=1 // pred_fallthru
      _
    // Predicated region
    $region42: #{feature_embed.1} parent=1 // pred_check
      _
    $region43: #{feature_embed.1} parent=1 // pred_check_branch
      %40 = sbr.rel (0) target = $region45
    $region44: #{feature_embed.1} parent=1 // pred_region
      _
    $region45: #{feature_embed.1} parent=1 // pred_fallthru
      _
    // Predicated region
    $region46: #{feature_embed.1} parent=1 // pred_check
      _
    $region47: #{feature_embed.1} parent=1 // pred_check_branch
      %42 = sbr.rel (0) target = $region49
    $region48: #{feature_embed.1} parent=1 // pred_region
      _
    $region49: #{feature_embed.1} parent=1 // pred_fallthru
      _
    // Predicated region
    $region50: #{feature_embed.1} parent=1 // pred_check
      _
    $region51: #{feature_embed.1} parent=1 // pred_check_branch
      %44 = sbr.rel (0) target = $region53
    $region52: #{feature_embed.1} parent=1 // pred_region
      _
    $region53: #{feature_embed.1} parent=1 // pred_fallthru
      _
    %v46 = vlaneseq
    %v47 = vand.u32 %v46, 127
    %vm48 = vcmp.lt.s32.totalorder %v47, 37
    %v49 = vld [vmem:[%s1] sm:$0xf]
    %v50 = vld [vmem:[%s1 + $0x4] sm:$0xf]
    %v51 = vld [vmem:[%s1 + $0x8] sm:$0xf]
    %v52 = vld [vmem:[%s1 + $0xc] sm:$0xf]
    %v53 = vld [vmem:[%s1 + $0x10] sm:$0xf]
    %v54 = vld [vmem:[%s1 + $0x14] sm:$0xf]
    %v55 = vld [vmem:[%s1 + $0x18] sm:$0xf]
    %v56 = vld [vmem:[%s1 + $0x1c] sm:$0xf]
    %v57 = vld [vmem:[%s1 + $0x20] sm:$0xf]
    %v58 = vld [vmem:[%s1 + $0x24] sm:$0xf]
    %v59 = vld [vmem:[%s1 + $0x28] sm:$0xf]
    %v60 = vld [vmem:[%s1 + $0x2c] sm:$0xf]
    %v61 = vld [vmem:[%s1 + $0x30] sm:$0xf]
    %v62 = vld [vmem:[%s1 + $0x34] sm:$0xf]
    %v63 = vld [vmem:[%s1 + $0x38] sm:$0xf]
    %v64 = vld [vmem:[%s1 + $0x3c] sm:$0xf]
    %v65 = vld [vmem:[%s1 + $0x40] sm:$0xf]
    %v66 = vld [vmem:[%s1 + $0x44] sm:$0xf]
    %v67 = vld [vmem:[%s1 + $0x48] sm:$0xf]
    %v68 = vld [vmem:[%s1 + $0x4c] sm:$0xf]
    %v69 = vld [vmem:[%s1 + $0x50] sm:$0xf]
    %v70 = vld [vmem:[%s1 + $0x54] sm:$0xf]
    %v71 = vld [vmem:[%s1 + $0x58] sm:$0xf]
    %v72 = vld [vmem:[%s1 + $0x5c] sm:$0xf]
    %v73 = vld [vmem:[%s5] sm:$0xf]
    %v74 = vld [vmem:[%s5 + $0x4] sm:$0xf]
    %v75 = vld [vmem:[%s5 + $0x8] sm:$0xf]
    %v76 = vld [vmem:[%s5 + $0xc] sm:$0xf]
    %v77 = vld [vmem:[%s5 + $0x10] sm:$0xf]
    %v78 = vld [vmem:[%s5 + $0x14] sm:$0xf]
    %v79 = vld [vmem:[%s5 + $0x18] sm:$0xf]
    %v80 = vld [vmem:[%s5 + $0x1c] sm:$0xf]
    %v81 = vld [vmem:[%s5 + $0x20] sm:$0xf]
    %v82 = vld [vmem:[%s5 + $0x24] sm:$0xf]
    %v83 = vld [vmem:[%s5 + $0x28] sm:$0xf]
    %v84 = vld [vmem:[%s6] sm:$0x1]
    %v86 = vlaneseq
    %v87 = vshrl.u32 %v86, 7
    %v88 = vsub.s32 0, %v87
    %v89 = vrot.slane %v84, %v88
    %v115 = vunpack.c.l.b16 %v49
    %v116 = vunpack.c.l.b16 %v50
    %v117 = vunpack.c.l.b16 %v51
    %v118 = vunpack.c.l.b16 %v52
    %v119 = vunpack.c.l.b16 %v53
    %v120 = vunpack.c.l.b16 %v54
    %v121 = vunpack.c.l.b16 %v55
    %v122 = vunpack.c.l.b16 %v56
    %v123 = vunpack.c.l.b16 %v57
    %v124 = vunpack.c.l.b16 %v58
    %v125 = vunpack.c.l.b16 %v59
    %v126 = vunpack.c.l.b16 %v60
    %v127 = vunpack.c.l.b16 %v61
    %v128 = vunpack.c.l.b16 %v62
    %v129 = vunpack.c.l.b16 %v63
    %v130 = vunpack.c.l.b16 %v64
    %v131 = vunpack.c.l.b16 %v65
    %v132 = vunpack.c.l.b16 %v66
    %v133 = vunpack.c.l.b16 %v67
    %v134 = vunpack.c.l.b16 %v68
    %v135 = vunpack.c.l.b16 %v69
    %v136 = vunpack.c.l.b16 %v70
    %v137 = vunpack.c.l.b16 %v71
    %v138 = vunpack.c.l.b16 %v72
    %v139 = vpack.c.b16 %v116, %v115
    %v140 = vpack.c.b16 %v118, %v117
    %v141 = vpack.c.b16 %v120, %v119
    %v142 = vpack.c.b16 %v122, %v121
    %v143 = vpack.c.b16 %v124, %v123
    %v144 = vpack.c.b16 %v126, %v125
    %v145 = vpack.c.b16 %v128, %v127
    %v146 = vpack.c.b16 %v130, %v129
    %v147 = vpack.c.b16 %v132, %v131
    %v148 = vpack.c.b16 %v134, %v133
    %v149 = vpack.c.b16 %v136, %v135
    %v150 = vpack.c.b16 %v138, %v137
    %v162 = vunpack.c.l.b16 %v73
    %v163 = vunpack.c.l.b16 %v74
    %v164 = vunpack.c.l.b16 %v75
    %v165 = vunpack.c.l.b16 %v76
    %v166 = vunpack.c.l.b16 %v77
    %v167 = vunpack.c.l.b16 %v78
    %v168 = vunpack.c.l.b16 %v79
    %v169 = vunpack.c.l.b16 %v80
    %v170 = vunpack.c.l.b16 %v81
    %v171 = vunpack.c.l.b16 %v82
    %v172 = vunpack.c.l.b16 %v83
    %v173 = vpack.c.b16 %v163, %v162
    %v174 = vpack.c.b16 %v165, %v164
    %v175 = vpack.c.b16 %v167, %v166
    %v176 = vpack.c.b16 %v169, %v168
    %v177 = vpack.c.b16 %v171, %v170
    %v178 = vpack.c.b16 %v172, %v172
    %vm184 = vcmask 711680
    %v186 = vsel %vm184, %v139, 0
    %v189 = vsel %vm184, %v140, 0
    %v192 = vsel %vm184, %v141, 0
    %v195 = vsel %vm184, %v142, 0
    %v198 = vsel %vm184, %v143, 0
    %v201 = vsel %vm184, %v144, 0
    %v204 = vsel %vm184, %v145, 0
    %v207 = vsel %vm184, %v146, 0
    %v210 = vsel %vm184, %v147, 0
    %v213 = vsel %vm184, %v148, 0
    %v216 = vsel %vm184, %v149, 0
    %v219 = vsel %vm184, %v150, 0
    %vm221 = vcmask 1042432
    %vm222 = vcmask 1043456
    %v223 = vsel %vm221, 4294967295, 65535
    %v224 = vsel %vm222, %v223, 0
    %v226 = vand.u32 %v178, %v224
    %228 = vmatprep.subr.bf16.mxu0 0
    %229 = vmatpush1.bf16.msra.mxu0 0
    %230 = vmatprep.subr.bf16.mxu0 0
    %231 = vmatpush1.bf16.msra.mxu0 0
    %232 = vmatprep.subr.bf16.mxu0 0
    %233 = vmatpush1.bf16.msra.mxu0 %v226
    %234 = vmatprep.subr.bf16.mxu0 0
    %235 = vmatpush1.bf16.msra.mxu0 %v177
    %236 = vmatprep.subr.bf16.mxu0 0
    %237 = vmatpush1.bf16.msra.mxu0 %v176
    %238 = vmatprep.subr.bf16.mxu0 0
    %239 = vmatpush1.bf16.msra.mxu0 %v175
    %240 = vmatprep.subr.bf16.mxu0 0
    %241 = vmatpush1.bf16.msra.mxu0 %v174
    %242 = vmatprep.subr.bf16.mxu0 0
    %243 = vmatpush1.bf16.msra.mxu0 %v173
    %244 = vmatprep.subr.bf16.mxu0 0
    %245 = vmatpush2.bf16.msra.mxu0 0
    %246 = vmatprep.subr.bf16.mxu0 0
    %247 = vmatpush2.bf16.msra.mxu0 0
    %248 = vmatprep.subr.bf16.mxu0 0
    %249 = vmatpush2.bf16.msra.mxu0 0
    %250 = vmatprep.subr.bf16.mxu0 0
    %251 = vmatpush2.bf16.msra.mxu0 0
    %252 = vmatprep.subr.bf16.mxu0 0
    %253 = vmatpush2.bf16.msra.mxu0 0
    %254 = vmatprep.subr.bf16.mxu0 0
    %255 = vmatpush2.bf16.msra.mxu0 0
    %256 = vmatprep.subr.bf16.mxu0 0
    %257 = vmatpush2.bf16.msra.mxu0 0
    %258 = vmatprep.subr.bf16.mxu0 0
    %259 = vmatpush2.bf16.msra.mxu0 0
    %260 = vmatprep.mubr.bf16.mxu0 0
    %261 = vmatmul.mubr.bf16.gmra.mxu0 %v186
    %v262 = vpop.f32.mrf.mxu0
    %v263 = vadd.f32 %v89, %v262
    %v264 = vpop.f32.mrf.mxu0
    %v265 = vpop.f32.mrf.mxu0
    %v266 = vadd.f32 %v89, %v265
    %v267 = vpop.f32.mrf.mxu0
    %268 = vmatprep.mubr.bf16.mxu0 0
    %269 = vmatmul.mubr.bf16.gmra.mxu0 %v189
    %v270 = vpop.f32.mrf.mxu0
    %v271 = vadd.f32 %v89, %v270
    %v272 = vpop.f32.mrf.mxu0
    %v273 = vpop.f32.mrf.mxu0
    %v274 = vadd.f32 %v89, %v273
    %v275 = vpop.f32.mrf.mxu0
    %276 = vmatprep.mubr.bf16.mxu0 0
    %277 = vmatmul.mubr.bf16.gmra.mxu0 %v192
    %v278 = vpop.f32.mrf.mxu0
    %v279 = vadd.f32 %v89, %v278
    %v280 = vpop.f32.mrf.mxu0
    %v281 = vpop.f32.mrf.mxu0
    %v282 = vadd.f32 %v89, %v281
    %v283 = vpop.f32.mrf.mxu0
    %284 = vmatprep.mubr.bf16.mxu0 0
    %285 = vmatmul.mubr.bf16.gmra.mxu0 %v195
    %v286 = vpop.f32.mrf.mxu0
    %v287 = vadd.f32 %v89, %v286
    %v288 = vpop.f32.mrf.mxu0
    %v289 = vpop.f32.mrf.mxu0
    %v290 = vadd.f32 %v89, %v289
    %v291 = vpop.f32.mrf.mxu0
    %292 = vmatprep.mubr.bf16.mxu0 0
    %293 = vmatmul.mubr.bf16.gmra.mxu0 %v198
    %v294 = vpop.f32.mrf.mxu0
    %v295 = vadd.f32 %v89, %v294
    %v296 = vpop.f32.mrf.mxu0
    %v297 = vpop.f32.mrf.mxu0
    %v298 = vadd.f32 %v89, %v297
    %v299 = vpop.f32.mrf.mxu0
    %300 = vmatprep.mubr.bf16.mxu0 0
    %301 = vmatmul.mubr.bf16.gmra.mxu0 %v201
    %v302 = vpop.f32.mrf.mxu0
    %v303 = vadd.f32 %v89, %v302
    %v304 = vpop.f32.mrf.mxu0
    %v305 = vpop.f32.mrf.mxu0
    %v306 = vadd.f32 %v89, %v305
    %v307 = vpop.f32.mrf.mxu0
    %308 = vmatprep.mubr.bf16.mxu0 0
    %309 = vmatmul.mubr.bf16.gmra.mxu0 %v204
    %v310 = vpop.f32.mrf.mxu0
    %v311 = vadd.f32 %v89, %v310
    %v312 = vpop.f32.mrf.mxu0
    %v313 = vpop.f32.mrf.mxu0
    %v314 = vadd.f32 %v89, %v313
    %v315 = vpop.f32.mrf.mxu0
    %316 = vmatprep.mubr.bf16.mxu0 0
    %317 = vmatmul.mubr.bf16.gmra.mxu0 %v207
    %v318 = vpop.f32.mrf.mxu0
    %v319 = vadd.f32 %v89, %v318
    %v320 = vpop.f32.mrf.mxu0
    %v321 = vpop.f32.mrf.mxu0
    %v322 = vadd.f32 %v89, %v321
    %v323 = vpop.f32.mrf.mxu0
    %324 = vmatprep.mubr.bf16.mxu0 0
    %325 = vmatmul.mubr.bf16.gmra.mxu0 %v210
    %v326 = vpop.f32.mrf.mxu0
    %v327 = vadd.f32 %v89, %v326
    %v328 = vpop.f32.mrf.mxu0
    %v329 = vpop.f32.mrf.mxu0
    %v330 = vadd.f32 %v89, %v329
    %v331 = vpop.f32.mrf.mxu0
    %332 = vmatprep.mubr.bf16.mxu0 0
    %333 = vmatmul.mubr.bf16.gmra.mxu0 %v213
    %v334 = vpop.f32.mrf.mxu0
    %v335 = vadd.f32 %v89, %v334
    %v336 = vpop.f32.mrf.mxu0
    %v337 = vpop.f32.mrf.mxu0
    %v338 = vadd.f32 %v89, %v337
    %v339 = vpop.f32.mrf.mxu0
    %340 = vmatprep.mubr.bf16.mxu0 0
    %341 = vmatmul.mubr.bf16.gmra.mxu0 %v216
    %v342 = vpop.f32.mrf.mxu0
    %v343 = vadd.f32 %v89, %v342
    %v344 = vpop.f32.mrf.mxu0
    %v345 = vpop.f32.mrf.mxu0
    %v346 = vadd.f32 %v89, %v345
    %v347 = vpop.f32.mrf.mxu0
    %348 = vmatprep.mubr.bf16.mxu0 0
    %349 = vmatmul.mubr.bf16.gmra.mxu0 %v219
    %v350 = vpop.f32.mrf.mxu0
    %v351 = vadd.f32 %v89, %v350
    %v352 = vpop.f32.mrf.mxu0
    %v353 = vpop.f32.mrf.mxu0
    %v354 = vadd.f32 %v89, %v353
    %v355 = vpop.f32.mrf.mxu0
    %356 = vdwg.mxu0
    %vm357 = vcmp.lt.f32.partialorder %v263, 0.0
    %vm358 = vcmp.lt.f32.partialorder %v266, 0.0
    %vm359 = vcmp.lt.f32.partialorder %v271, 0.0
    %vm360 = vcmp.lt.f32.partialorder %v274, 0.0
    %vm361 = vcmp.lt.f32.partialorder %v279, 0.0
    %vm362 = vcmp.lt.f32.partialorder %v282, 0.0
    %vm363 = vcmp.lt.f32.partialorder %v287, 0.0
    %vm364 = vcmp.lt.f32.partialorder %v290, 0.0
    %vm365 = vcmp.lt.f32.partialorder %v295, 0.0
    %vm366 = vcmp.lt.f32.partialorder %v298, 0.0
    %vm367 = vcmp.lt.f32.partialorder %v303, 0.0
    %vm368 = vcmp.lt.f32.partialorder %v306, 0.0
    %vm369 = vcmp.lt.f32.partialorder %v311, 0.0
    %vm370 = vcmp.lt.f32.partialorder %v314, 0.0
    %vm371 = vcmp.lt.f32.partialorder %v319, 0.0
    %vm372 = vcmp.lt.f32.partialorder %v322, 0.0
    %vm373 = vcmp.lt.f32.partialorder %v327, 0.0
    %vm374 = vcmp.lt.f32.partialorder %v330, 0.0
    %vm375 = vcmp.lt.f32.partialorder %v335, 0.0
    %vm376 = vcmp.lt.f32.partialorder %v338, 0.0
    %vm377 = vcmp.lt.f32.partialorder %v343, 0.0
    %vm378 = vcmp.lt.f32.partialorder %v346, 0.0
    %vm379 = vcmp.lt.f32.partialorder %v351, 0.0
    %vm380 = vcmp.lt.f32.partialorder %v354, 0.0
    %v381 = vsel %vm48, 1, 0
    %vm382 = vcmp.eq.s32.totalorder %v381, 1
    %vm383 = vmand %vm382, %vm357
    %vm384 = vmand %vm382, %vm358
    %vm385 = vmand %vm382, %vm359
    %vm386 = vmand %vm382, %vm360
    %vm387 = vmand %vm382, %vm361
    %vm388 = vmand %vm382, %vm362
    %vm389 = vmand %vm382, %vm363
    %vm390 = vmand %vm382, %vm364
    %vm391 = vmand %vm382, %vm365
    %vm392 = vmand %vm382, %vm366
    %vm393 = vmand %vm382, %vm367
    %vm394 = vmand %vm382, %vm368
    %vm395 = vmand %vm382, %vm369
    %vm396 = vmand %vm382, %vm370
    %vm397 = vmand %vm382, %vm371
    %vm398 = vmand %vm382, %vm372
    %vm399 = vmand %vm382, %vm373
    %vm400 = vmand %vm382, %vm374
    %vm401 = vmand %vm382, %vm375
    %vm402 = vmand %vm382, %vm376
    %vm403 = vmand %vm382, %vm377
    %vm404 = vmand %vm382, %vm378
    %vm405 = vmand %vm382, %vm379
    %vm406 = vmand %vm382, %vm380
    %v407 = vmul.f32 %v263, 0.01
    %v408 = vmul.f32 %v266, 0.01
    %v409 = vmul.f32 %v271, 0.01
    %v410 = vmul.f32 %v274, 0.01
    %v411 = vmul.f32 %v279, 0.01
    %v412 = vmul.f32 %v282, 0.01
    %v413 = vmul.f32 %v287, 0.01
    %v414 = vmul.f32 %v290, 0.01
    %v415 = vmul.f32 %v295, 0.01
    %v416 = vmul.f32 %v298, 0.01
    %v417 = vmul.f32 %v303, 0.01
    %v418 = vmul.f32 %v306, 0.01
    %v419 = vmul.f32 %v311, 0.01
    %v420 = vmul.f32 %v314, 0.01
    %v421 = vmul.f32 %v319, 0.01
    %v422 = vmul.f32 %v322, 0.01
    %v423 = vmul.f32 %v327, 0.01
    %v424 = vmul.f32 %v330, 0.01
    %v425 = vmul.f32 %v335, 0.01
    %v426 = vmul.f32 %v338, 0.01
    %v427 = vmul.f32 %v343, 0.01
    %v428 = vmul.f32 %v346, 0.01
    %v429 = vmul.f32 %v351, 0.01
    %v430 = vmul.f32 %v354, 0.01
    %v431 = vsel %vm383, %v407, %v263
    %v432 = vsel %vm384, %v408, %v266
    %v433 = vsel %vm385, %v409, %v271
    %v434 = vsel %vm386, %v410, %v274
    %v435 = vsel %vm387, %v411, %v279
    %v436 = vsel %vm388, %v412, %v282
    %v437 = vsel %vm389, %v413, %v287
    %v438 = vsel %vm390, %v414, %v290
    %v439 = vsel %vm391, %v415, %v295
    %v440 = vsel %vm392, %v416, %v298
    %v441 = vsel %vm393, %v417, %v303
    %v442 = vsel %vm394, %v418, %v306
    %v443 = vsel %vm395, %v419, %v311
    %v444 = vsel %vm396, %v420, %v314
    %v445 = vsel %vm397, %v421, %v319
    %v446 = vsel %vm398, %v422, %v322
    %v447 = vsel %vm399, %v423, %v327
    %v448 = vsel %vm400, %v424, %v330
    %v449 = vsel %vm401, %v425, %v335
    %v450 = vsel %vm402, %v426, %v338
    %v451 = vsel %vm403, %v427, %v343
    %v452 = vsel %vm404, %v428, %v346
    %v453 = vsel %vm405, %v429, %v351
    %v454 = vsel %vm406, %v430, %v354
    %v455 = vpack.c.bf16 %v432, %v431
    %v456 = vpack.c.bf16 %v434, %v433
    %v457 = vpack.c.bf16 %v436, %v435
    %v458 = vpack.c.bf16 %v438, %v437
    %v459 = vpack.c.bf16 %v440, %v439
    %v460 = vpack.c.bf16 %v442, %v441
    %v461 = vpack.c.bf16 %v444, %v443
    %v462 = vpack.c.bf16 %v446, %v445
    %v463 = vpack.c.bf16 %v448, %v447
    %v464 = vpack.c.bf16 %v450, %v449
    %v465 = vpack.c.bf16 %v452, %v451
    %v466 = vpack.c.bf16 %v454, %v453
    %v467 = vld [vmem:[%s7] sm:$0xf]
    %v468 = vld [vmem:[%s7 + $0x4] sm:$0xf]
    %v469 = vld [vmem:[%s7 + $0x8] sm:$0xf]
    %v470 = vld [vmem:[%s7 + $0xc] sm:$0xf]
    %v471 = vld [vmem:[%s7 + $0x10] sm:$0xf]
    %v472 = vld [vmem:[%s7 + $0x14] sm:$0xf]
    %v473 = vld [vmem:[%s7 + $0x18] sm:$0xf]
    %v474 = vld [vmem:[%s7 + $0x1c] sm:$0xf]
    %v475 = vld [vmem:[%s7 + $0x20] sm:$0xf]
    %v476 = vld [vmem:[%s7 + $0x24] sm:$0xf]
    %v477 = vld [vmem:[%s7 + $0x28] sm:$0xf]
    %v478 = vld [vmem:[%s7 + $0x2c] sm:$0xf]
    %v479 = vld [vmem:[%s7 + $0x30] sm:$0xf]
    %v480 = vld [vmem:[%s7 + $0x34] sm:$0xf]
    %v481 = vld [vmem:[%s7 + $0x38] sm:$0xf]
    %v482 = vld [vmem:[%s7 + $0x3c] sm:$0xf]
    %v483 = vld [vmem:[%s8] sm:$0x1]
    %v485 = vlaneseq
    %v486 = vshrl.u32 %v485, 7
    %v487 = vsub.s32 0, %v486
    %v488 = vrot.slane %v483, %v487
    %v506 = vunpack.c.l.b16 %v467
    %v507 = vunpack.c.l.b16 %v468
    %v508 = vunpack.c.l.b16 %v469
    %v509 = vunpack.c.l.b16 %v470
    %v510 = vunpack.c.l.b16 %v471
    %v511 = vunpack.c.l.b16 %v472
    %v512 = vunpack.c.l.b16 %v473
    %v513 = vunpack.c.l.b16 %v474
    %v514 = vunpack.c.l.b16 %v475
    %v515 = vunpack.c.l.b16 %v476
    %v516 = vunpack.c.l.b16 %v477
    %v517 = vunpack.c.l.b16 %v478
    %v518 = vunpack.c.l.b16 %v479
    %v519 = vunpack.c.l.b16 %v480
    %v520 = vunpack.c.l.b16 %v481
    %v521 = vunpack.c.l.b16 %v482
    %v522 = vpack.c.b16 %v507, %v506
    %v523 = vpack.c.b16 %v509, %v508
    %v524 = vpack.c.b16 %v511, %v510
    %v525 = vpack.c.b16 %v513, %v512
    %v526 = vpack.c.b16 %v515, %v514
    %v527 = vpack.c.b16 %v517, %v516
    %v528 = vpack.c.b16 %v519, %v518
    %v529 = vpack.c.b16 %v521, %v520
    %538 = vmatprep.subr.bf16.mxu0 0
    %539 = vmatpush1.bf16.msra.mxu0 %v529
    %540 = vmatprep.subr.bf16.mxu0 0
    %541 = vmatpush1.bf16.msra.mxu0 %v528
    %542 = vmatprep.subr.bf16.mxu0 0
    %543 = vmatpush1.bf16.msra.mxu0 %v527
    %544 = vmatprep.subr.bf16.mxu0 0
    %545 = vmatpush1.bf16.msra.mxu0 %v526
    %546 = vmatprep.subr.bf16.mxu0 0
    %547 = vmatpush1.bf16.msra.mxu0 %v525
    %548 = vmatprep.subr.bf16.mxu0 0
    %549 = vmatpush1.bf16.msra.mxu0 %v524
    %550 = vmatprep.subr.bf16.mxu0 0
    %551 = vmatpush1.bf16.msra.mxu0 %v523
    %552 = vmatprep.subr.bf16.mxu0 0
    %553 = vmatpush1.bf16.msra.mxu0 %v522
    %554 = vmatprep.subr.bf16.mxu0 0
    %555 = vmatpush2.bf16.msra.mxu0 0
    %556 = vmatprep.subr.bf16.mxu0 0
    %557 = vmatpush2.bf16.msra.mxu0 0
    %558 = vmatprep.subr.bf16.mxu0 0
    %559 = vmatpush2.bf16.msra.mxu0 0
    %560 = vmatprep.subr.bf16.mxu0 0
    %561 = vmatpush2.bf16.msra.mxu0 0
    %562 = vmatprep.subr.bf16.mxu0 0
    %563 = vmatpush2.bf16.msra.mxu0 0
    %564 = vmatprep.subr.bf16.mxu0 0
    %565 = vmatpush2.bf16.msra.mxu0 0
    %566 = vmatprep.subr.bf16.mxu0 0
    %567 = vmatpush2.bf16.msra.mxu0 0
    %568 = vmatprep.subr.bf16.mxu0 0
    %569 = vmatpush2.bf16.msra.mxu0 0
    %570 = vmatprep.mubr.bf16.mxu0 0
    %571 = vmatmul.mubr.bf16.gmra.mxu0 %v455
    %v572 = vpop.f32.mrf.mxu0
    %v573 = vadd.f32 %v488, %v572
    %v574 = vpop.f32.mrf.mxu0
    %v575 = vpop.f32.mrf.mxu0
    %v576 = vadd.f32 %v488, %v575
    %v577 = vpop.f32.mrf.mxu0
    %578 = vmatprep.mubr.bf16.mxu0 0
    %579 = vmatmul.mubr.bf16.gmra.mxu0 %v456
    %v580 = vpop.f32.mrf.mxu0
    %v581 = vadd.f32 %v488, %v580
    %v582 = vpop.f32.mrf.mxu0
    %v583 = vpop.f32.mrf.mxu0
    %v584 = vadd.f32 %v488, %v583
    %v585 = vpop.f32.mrf.mxu0
    %586 = vmatprep.mubr.bf16.mxu0 0
    %587 = vmatmul.mubr.bf16.gmra.mxu0 %v457
    %v588 = vpop.f32.mrf.mxu0
    %v589 = vadd.f32 %v488, %v588
    %v590 = vpop.f32.mrf.mxu0
    %v591 = vpop.f32.mrf.mxu0
    %v592 = vadd.f32 %v488, %v591
    %v593 = vpop.f32.mrf.mxu0
    %594 = vmatprep.mubr.bf16.mxu0 0
    %595 = vmatmul.mubr.bf16.gmra.mxu0 %v458
    %v596 = vpop.f32.mrf.mxu0
    %v597 = vadd.f32 %v488, %v596
    %v598 = vpop.f32.mrf.mxu0
    %v599 = vpop.f32.mrf.mxu0
    %v600 = vadd.f32 %v488, %v599
    %v601 = vpop.f32.mrf.mxu0
    %602 = vmatprep.mubr.bf16.mxu0 0
    %603 = vmatmul.mubr.bf16.gmra.mxu0 %v459
    %v604 = vpop.f32.mrf.mxu0
    %v605 = vadd.f32 %v488, %v604
    %v606 = vpop.f32.mrf.mxu0
    %v607 = vpop.f32.mrf.mxu0
    %v608 = vadd.f32 %v488, %v607
    %v609 = vpop.f32.mrf.mxu0
    %610 = vmatprep.mubr.bf16.mxu0 0
    %611 = vmatmul.mubr.bf16.gmra.mxu0 %v460
    %v612 = vpop.f32.mrf.mxu0
    %v613 = vadd.f32 %v488, %v612
    %v614 = vpop.f32.mrf.mxu0
    %v615 = vpop.f32.mrf.mxu0
    %v616 = vadd.f32 %v488, %v615
    %v617 = vpop.f32.mrf.mxu0
    %618 = vmatprep.mubr.bf16.mxu0 0
    %619 = vmatmul.mubr.bf16.gmra.mxu0 %v461
    %v620 = vpop.f32.mrf.mxu0
    %v621 = vadd.f32 %v488, %v620
    %v622 = vpop.f32.mrf.mxu0
    %v623 = vpop.f32.mrf.mxu0
    %v624 = vadd.f32 %v488, %v623
    %v625 = vpop.f32.mrf.mxu0
    %626 = vmatprep.mubr.bf16.mxu0 0
    %627 = vmatmul.mubr.bf16.gmra.mxu0 %v462
    %v628 = vpop.f32.mrf.mxu0
    %v629 = vadd.f32 %v488, %v628
    %v630 = vpop.f32.mrf.mxu0
    %v631 = vpop.f32.mrf.mxu0
    %v632 = vadd.f32 %v488, %v631
    %v633 = vpop.f32.mrf.mxu0
    %634 = vmatprep.mubr.bf16.mxu0 0
    %635 = vmatmul.mubr.bf16.gmra.mxu0 %v463
    %v636 = vpop.f32.mrf.mxu0
    %v637 = vadd.f32 %v488, %v636
    %v638 = vpop.f32.mrf.mxu0
    %v639 = vpop.f32.mrf.mxu0
    %v640 = vadd.f32 %v488, %v639
    %v641 = vpop.f32.mrf.mxu0
    %642 = vmatprep.mubr.bf16.mxu0 0
    %643 = vmatmul.mubr.bf16.gmra.mxu0 %v464
    %v644 = vpop.f32.mrf.mxu0
    %v645 = vadd.f32 %v488, %v644
    %v646 = vpop.f32.mrf.mxu0
    %v647 = vpop.f32.mrf.mxu0
    %v648 = vadd.f32 %v488, %v647
    %v649 = vpop.f32.mrf.mxu0
    %650 = vmatprep.mubr.bf16.mxu0 0
    %651 = vmatmul.mubr.bf16.gmra.mxu0 %v465
    %v652 = vpop.f32.mrf.mxu0
    %v653 = vadd.f32 %v488, %v652
    %v654 = vpop.f32.mrf.mxu0
    %v655 = vpop.f32.mrf.mxu0
    %v656 = vadd.f32 %v488, %v655
    %v657 = vpop.f32.mrf.mxu0
    %658 = vmatprep.mubr.bf16.mxu0 0
    %659 = vmatmul.mubr.bf16.gmra.mxu0 %v466
    %v660 = vpop.f32.mrf.mxu0
    %v661 = vadd.f32 %v488, %v660
    %v662 = vpop.f32.mrf.mxu0
    %v663 = vpop.f32.mrf.mxu0
    %v664 = vadd.f32 %v488, %v663
    %v665 = vpop.f32.mrf.mxu0
    %666 = vdwg.mxu0
    %vm667 = vcmp.lt.f32.partialorder %v573, 0.0
    %vm668 = vcmp.lt.f32.partialorder %v576, 0.0
    %vm669 = vcmp.lt.f32.partialorder %v581, 0.0
    %vm670 = vcmp.lt.f32.partialorder %v584, 0.0
    %vm671 = vcmp.lt.f32.partialorder %v589, 0.0
    %vm672 = vcmp.lt.f32.partialorder %v592, 0.0
    %vm673 = vcmp.lt.f32.partialorder %v597, 0.0
    %vm674 = vcmp.lt.f32.partialorder %v600, 0.0
    %vm675 = vcmp.lt.f32.partialorder %v605, 0.0
    %vm676 = vcmp.lt.f32.partialorder %v608, 0.0
    %vm677 = vcmp.lt.f32.partialorder %v613, 0.0
    %vm678 = vcmp.lt.f32.partialorder %v616, 0.0
    %vm679 = vcmp.lt.f32.partialorder %v621, 0.0
    %vm680 = vcmp.lt.f32.partialorder %v624, 0.0
    %vm681 = vcmp.lt.f32.partialorder %v629, 0.0
    %vm682 = vcmp.lt.f32.partialorder %v632, 0.0
    %vm683 = vcmp.lt.f32.partialorder %v637, 0.0
    %vm684 = vcmp.lt.f32.partialorder %v640, 0.0
    %vm685 = vcmp.lt.f32.partialorder %v645, 0.0
    %vm686 = vcmp.lt.f32.partialorder %v648, 0.0
    %vm687 = vcmp.lt.f32.partialorder %v653, 0.0
    %vm688 = vcmp.lt.f32.partialorder %v656, 0.0
    %vm689 = vcmp.lt.f32.partialorder %v661, 0.0
    %vm690 = vcmp.lt.f32.partialorder %v664, 0.0
    %vm691 = vmand %vm382, %vm667
    %vm692 = vmand %vm382, %vm668
    %vm693 = vmand %vm382, %vm669
    %vm694 = vmand %vm382, %vm670
    %vm695 = vmand %vm382, %vm671
    %vm696 = vmand %vm382, %vm672
    %vm697 = vmand %vm382, %vm673
    %vm698 = vmand %vm382, %vm674
    %vm699 = vmand %vm382, %vm675
    %vm700 = vmand %vm382, %vm676
    %vm701 = vmand %vm382, %vm677
    %vm702 = vmand %vm382, %vm678
    %vm703 = vmand %vm382, %vm679
    %vm704 = vmand %vm382, %vm680
    %vm705 = vmand %vm382, %vm681
    %vm706 = vmand %vm382, %vm682
    %vm707 = vmand %vm382, %vm683
    %vm708 = vmand %vm382, %vm684
    %vm709 = vmand %vm382, %vm685
    %vm710 = vmand %vm382, %vm686
    %vm711 = vmand %vm382, %vm687
    %vm712 = vmand %vm382, %vm688
    %vm713 = vmand %vm382, %vm689
    %vm714 = vmand %vm382, %vm690
    %v715 = vmul.f32 %v573, 0.01
    %v716 = vmul.f32 %v576, 0.01
    %v717 = vmul.f32 %v581, 0.01
    %v718 = vmul.f32 %v584, 0.01
    %v719 = vmul.f32 %v589, 0.01
    %v720 = vmul.f32 %v592, 0.01
    %v721 = vmul.f32 %v597, 0.01
    %v722 = vmul.f32 %v600, 0.01
    %v723 = vmul.f32 %v605, 0.01
    %v724 = vmul.f32 %v608, 0.01
    %v725 = vmul.f32 %v613, 0.01
    %v726 = vmul.f32 %v616, 0.01
    %v727 = vmul.f32 %v621, 0.01
    %v728 = vmul.f32 %v624, 0.01
    %v729 = vmul.f32 %v629, 0.01
    %v730 = vmul.f32 %v632, 0.01
    %v731 = vmul.f32 %v637, 0.01
    %v732 = vmul.f32 %v640, 0.01
    %v733 = vmul.f32 %v645, 0.01
    %v734 = vmul.f32 %v648, 0.01
    %v735 = vmul.f32 %v653, 0.01
    %v736 = vmul.f32 %v656, 0.01
    %v737 = vmul.f32 %v661, 0.01
    %v738 = vmul.f32 %v664, 0.01
    %v739 = vsel %vm691, %v715, %v573
    %v740 = vsel %vm692, %v716, %v576
    %v741 = vsel %vm693, %v717, %v581
    %v742 = vsel %vm694, %v718, %v584
    %v743 = vsel %vm695, %v719, %v589
    %v744 = vsel %vm696, %v720, %v592
    %v745 = vsel %vm697, %v721, %v597
    %v746 = vsel %vm698, %v722, %v600
    %v747 = vsel %vm699, %v723, %v605
    %v748 = vsel %vm700, %v724, %v608
    %v749 = vsel %vm701, %v725, %v613
    %v750 = vsel %vm702, %v726, %v616
    %v751 = vsel %vm703, %v727, %v621
    %v752 = vsel %vm704, %v728, %v624
    %v753 = vsel %vm705, %v729, %v629
    %v754 = vsel %vm706, %v730, %v632
    %v755 = vsel %vm707, %v731, %v637
    %v756 = vsel %vm708, %v732, %v640
    %v757 = vsel %vm709, %v733, %v645
    %v758 = vsel %vm710, %v734, %v648
    %v759 = vsel %vm711, %v735, %v653
    %v760 = vsel %vm712, %v736, %v656
    %v761 = vsel %vm713, %v737, %v661
    %v762 = vsel %vm714, %v738, %v664
    %v763 = vadd.f32 %v739, %v740
    %v764 = vadd.f32 %v763, %v741
    %v765 = vrot.slane %v764, 4
    %v766 = vadd.f32 %v764, %v765
    %v767 = vrot.slane %v766, 2
    %v768 = vadd.f32 %v766, %v767
    %v769 = vrot.slane %v768, 1
    %v770 = vadd.f32 %v768, %v769
    %v771 = vadd.f32 %v742, %v743
    %v772 = vadd.f32 %v771, %v744
    %v773 = vrot.slane %v772, 4
    %v774 = vadd.f32 %v772, %v773
    %v775 = vrot.slane %v774, 2
    %v776 = vadd.f32 %v774, %v775
    %v777 = vrot.slane %v776, 1
    %v778 = vadd.f32 %v776, %v777
    %v779 = vadd.f32 %v745, %v746
    %v780 = vadd.f32 %v779, %v747
    %v781 = vrot.slane %v780, 4
    %v782 = vadd.f32 %v780, %v781
    %v783 = vrot.slane %v782, 2
    %v784 = vadd.f32 %v782, %v783
    %v785 = vrot.slane %v784, 1
    %v786 = vadd.f32 %v784, %v785
    %v787 = vadd.f32 %v748, %v749
    %v788 = vadd.f32 %v787, %v750
    %v789 = vrot.slane %v788, 4
    %v790 = vadd.f32 %v788, %v789
    %v791 = vrot.slane %v790, 2
    %v792 = vadd.f32 %v790, %v791
    %v793 = vrot.slane %v792, 1
    %v794 = vadd.f32 %v792, %v793
    %v795 = vadd.f32 %v751, %v752
    %v796 = vadd.f32 %v795, %v753
    %v797 = vrot.slane %v796, 4
    %v798 = vadd.f32 %v796, %v797
    %v799 = vrot.slane %v798, 2
    %v800 = vadd.f32 %v798, %v799
    %v801 = vrot.slane %v800, 1
    %v802 = vadd.f32 %v800, %v801
    %v803 = vadd.f32 %v754, %v755
    %v804 = vadd.f32 %v803, %v756
    %v805 = vrot.slane %v804, 4
    %v806 = vadd.f32 %v804, %v805
    %v807 = vrot.slane %v806, 2
    %v808 = vadd.f32 %v806, %v807
    %v809 = vrot.slane %v808, 1
    %v810 = vadd.f32 %v808, %v809
    %v811 = vadd.f32 %v757, %v758
    %v812 = vadd.f32 %v811, %v759
    %v813 = vrot.slane %v812, 4
    %v814 = vadd.f32 %v812, %v813
    %v815 = vrot.slane %v814, 2
    %v816 = vadd.f32 %v814, %v815
    %v817 = vrot.slane %v816, 1
    %v818 = vadd.f32 %v816, %v817
    %v819 = vadd.f32 %v760, %v761
    %v820 = vadd.f32 %v819, %v762
    %v821 = vrot.slane %v820, 4
    %v822 = vadd.f32 %v820, %v821
    %v823 = vrot.slane %v822, 2
    %v824 = vadd.f32 %v822, %v823
    %v825 = vrot.slane %v824, 1
    %v826 = vadd.f32 %v824, %v825
    %v827 = vld [vmem:[%s3] sm:$0xff]
    %829 = vset.pattern.permute.xlu0 0
    %830 = vperm.xlu0 %829, %v827
    %v831 = vpop.permute.xlu0 %830
    %v832 = vrot.slane %v831, 1
    %v833 = vrot.slane %v831, 2
    %v834 = vrot.slane %v831, 3
    %v835 = vrot.slane %v831, 4
    %v836 = vrot.slane %v831, 5
    %v837 = vrot.slane %v831, 6
    %v838 = vrot.slane %v831, 7
    %v847 = vmul.f32 %v770, %v831
    %v848 = vmul.f32 %v778, %v832
    %v849 = vmul.f32 %v786, %v833
    %v850 = vmul.f32 %v794, %v834
    %v851 = vmul.f32 %v802, %v835
    %v852 = vmul.f32 %v810, %v836
    %v853 = vmul.f32 %v818, %v837
    %v854 = vmul.f32 %v826, %v838
    %v855 = vld [vmem:[%s4] sm:$0xff]
    %v857 = vrot.slane %v855, 1
    %v858 = vrot.slane %v855, 2
    %v859 = vrot.slane %v855, 3
    %v860 = vrot.slane %v855, 4
    %v861 = vrot.slane %v855, 5
    %v862 = vrot.slane %v855, 6
    %v863 = vrot.slane %v855, 7
    %v872 = vadd.f32 %v847, %v855
    %v873 = vadd.f32 %v848, %v857
    %v874 = vadd.f32 %v849, %v858
    %v875 = vadd.f32 %v850, %v859
    %v876 = vadd.f32 %v851, %v860
    %v877 = vadd.f32 %v852, %v861
    %v878 = vadd.f32 %v853, %v862
    %v879 = vadd.f32 %v854, %v863
    %v880 = vld [vmem:[%s2] sm:$0xff]
    %v881 = vld [vmem:[%s2 + $0x8] sm:$0xff]
    %v882 = vld [vmem:[%s2 + $0x10] sm:$0xff]
    %v883 = vld [vmem:[%s2 + $0x18] sm:$0xff]
    %v884 = vld [vmem:[%s9] sm:$0xf]
    %v885 = vld [vmem:[%s9 + $0x4] sm:$0xf]
    %v886 = vld [vmem:[%s9 + $0x8] sm:$0xf]
    %v887 = vld [vmem:[%s9 + $0xc] sm:$0xf]
    %v888 = vld [vmem:[%s9 + $0x10] sm:$0xf]
    %v889 = vld [vmem:[%s9 + $0x14] sm:$0xf]
    %v890 = vld [vmem:[%s9 + $0x18] sm:$0xf]
    %v891 = vld [vmem:[%s9 + $0x1c] sm:$0xf]
    %v892 = vld [vmem:[%s9 + $0x20] sm:$0xf]
    %v893 = vld [vmem:[%s9 + $0x24] sm:$0xf]
    %v894 = vld [vmem:[%s9 + $0x28] sm:$0xf]
    %v895 = vld [vmem:[%s9 + $0x2c] sm:$0xf]
    %v896 = vld [vmem:[%s9 + $0x30] sm:$0xf]
    %v897 = vld [vmem:[%s9 + $0x34] sm:$0xf]
    %v898 = vld [vmem:[%s9 + $0x38] sm:$0xf]
    %v899 = vld [vmem:[%s9 + $0x3c] sm:$0xf]
    %v900 = vld [vmem:[%s9 + $0x40] sm:$0xf]
    %v901 = vld [vmem:[%s9 + $0x44] sm:$0xf]
    %v902 = vld [vmem:[%s9 + $0x48] sm:$0xf]
    %v903 = vld [vmem:[%s9 + $0x4c] sm:$0xf]
    %v904 = vld [vmem:[%s9 + $0x50] sm:$0xf]
    %v905 = vld [vmem:[%s9 + $0x54] sm:$0xf]
    %v906 = vld [vmem:[%s9 + $0x58] sm:$0xf]
    %v907 = vld [vmem:[%s9 + $0x5c] sm:$0xf]
    %v908 = vld [vmem:[%s9 + $0x60] sm:$0xf]
    %v909 = vld [vmem:[%s9 + $0x64] sm:$0xf]
    %v910 = vld [vmem:[%s9 + $0x68] sm:$0xf]
    %v911 = vld [vmem:[%s9 + $0x6c] sm:$0xf]
    %v912 = vld [vmem:[%s9 + $0x70] sm:$0xf]
    %v913 = vld [vmem:[%s9 + $0x74] sm:$0xf]
    %v914 = vld [vmem:[%s9 + $0x78] sm:$0xf]
    %v915 = vld [vmem:[%s9 + $0x7c] sm:$0xf]
    %v916 = vld [vmem:[%s9 + $0x80] sm:$0xf]
    %v917 = vld [vmem:[%s9 + $0x84] sm:$0xf]
    %v918 = vld [vmem:[%s9 + $0x88] sm:$0xf]
    %v919 = vld [vmem:[%s9 + $0x8c] sm:$0xf]
    %v920 = vld [vmem:[%s9 + $0x90] sm:$0xf]
    %v921 = vld [vmem:[%s9 + $0x94] sm:$0xf]
    %v922 = vld [vmem:[%s9 + $0x98] sm:$0xf]
    %v923 = vld [vmem:[%s9 + $0x9c] sm:$0xf]
    %v924 = vld [vmem:[%s9 + $0xa0] sm:$0xf]
    %v925 = vld [vmem:[%s9 + $0xa4] sm:$0xf]
    %v926 = vld [vmem:[%s9 + $0xa8] sm:$0xf]
    %v927 = vld [vmem:[%s9 + $0xac] sm:$0xf]
    %v928 = vld [vmem:[%s9 + $0xb0] sm:$0xf]
    %v929 = vld [vmem:[%s9 + $0xb4] sm:$0xf]
    %v930 = vld [vmem:[%s9 + $0xb8] sm:$0xf]
    %v931 = vld [vmem:[%s9 + $0xbc] sm:$0xf]
    %v932 = vld [vmem:[%s9 + $0xc0] sm:$0xf]
    %v933 = vld [vmem:[%s9 + $0xc4] sm:$0xf]
    %v934 = vld [vmem:[%s9 + $0xc8] sm:$0xf]
    %v935 = vld [vmem:[%s9 + $0xcc] sm:$0xf]
    %v936 = vld [vmem:[%s9 + $0xd0] sm:$0xf]
    %v937 = vld [vmem:[%s9 + $0xd4] sm:$0xf]
    %v938 = vld [vmem:[%s9 + $0xd8] sm:$0xf]
    %v939 = vld [vmem:[%s9 + $0xdc] sm:$0xf]
    %v940 = vld [vmem:[%s9 + $0xe0] sm:$0xf]
    %v941 = vld [vmem:[%s9 + $0xe4] sm:$0xf]
    %v942 = vld [vmem:[%s9 + $0xe8] sm:$0xf]
    %v943 = vld [vmem:[%s9 + $0xec] sm:$0xf]
    %v944 = vld [vmem:[%s9 + $0xf0] sm:$0xf]
    %v945 = vld [vmem:[%s9 + $0xf4] sm:$0xf]
    %v946 = vld [vmem:[%s9 + $0xf8] sm:$0xf]
    %v947 = vld [vmem:[%s9 + $0xfc] sm:$0xf]
    %v948 = vld [vmem:[%s9 + $0x100] sm:$0xf]
    %v949 = vld [vmem:[%s9 + $0x104] sm:$0xf]
    %v950 = vld [vmem:[%s9 + $0x108] sm:$0xf]
    %v951 = vld [vmem:[%s9 + $0x10c] sm:$0xf]
    %v952 = vld [vmem:[%s9 + $0x110] sm:$0xf]
    %v953 = vld [vmem:[%s9 + $0x114] sm:$0xf]
    %v954 = vld [vmem:[%s9 + $0x118] sm:$0xf]
    %v955 = vld [vmem:[%s9 + $0x11c] sm:$0xf]
    %v956 = vld [vmem:[%s9 + $0x120] sm:$0xf]
    %v957 = vld [vmem:[%s9 + $0x124] sm:$0xf]
    %v958 = vld [vmem:[%s9 + $0x128] sm:$0xf]
    %v959 = vld [vmem:[%s9 + $0x12c] sm:$0xf]
    %v960 = vld [vmem:[%s9 + $0x130] sm:$0xf]
    %v961 = vld [vmem:[%s9 + $0x134] sm:$0xf]
    %v962 = vld [vmem:[%s9 + $0x138] sm:$0xf]
    %v963 = vld [vmem:[%s9 + $0x13c] sm:$0xf]
    %v964 = vld [vmem:[%s9 + $0x140] sm:$0xf]
    %v965 = vld [vmem:[%s9 + $0x144] sm:$0xf]
    %v966 = vld [vmem:[%s9 + $0x148] sm:$0xf]
    %v967 = vld [vmem:[%s9 + $0x14c] sm:$0xf]
    %v968 = vld [vmem:[%s9 + $0x150] sm:$0xf]
    %v969 = vld [vmem:[%s9 + $0x154] sm:$0xf]
    %v970 = vld [vmem:[%s9 + $0x158] sm:$0xf]
    %v971 = vld [vmem:[%s9 + $0x15c] sm:$0xf]
    %v972 = vld [vmem:[%s9 + $0x160] sm:$0xf]
    %v973 = vld [vmem:[%s9 + $0x164] sm:$0xf]
    %v974 = vld [vmem:[%s9 + $0x168] sm:$0xf]
    %v975 = vld [vmem:[%s9 + $0x16c] sm:$0xf]
    %v976 = vld [vmem:[%s9 + $0x170] sm:$0xf]
    %v977 = vld [vmem:[%s9 + $0x174] sm:$0xf]
    %v978 = vld [vmem:[%s9 + $0x178] sm:$0xf]
    %v979 = vld [vmem:[%s9 + $0x17c] sm:$0xf]
    %v980 = vld [vmem:[%s9 + $0x180] sm:$0xf]
    %v981 = vld [vmem:[%s9 + $0x184] sm:$0xf]
    %v982 = vld [vmem:[%s9 + $0x188] sm:$0xf]
    %v983 = vld [vmem:[%s9 + $0x18c] sm:$0xf]
    %v984 = vld [vmem:[%s9 + $0x190] sm:$0xf]
    %v985 = vld [vmem:[%s9 + $0x194] sm:$0xf]
    %v986 = vld [vmem:[%s9 + $0x198] sm:$0xf]
    %v987 = vld [vmem:[%s9 + $0x19c] sm:$0xf]
    %v988 = vld [vmem:[%s9 + $0x1a0] sm:$0xf]
    %v989 = vld [vmem:[%s9 + $0x1a4] sm:$0xf]
    %v990 = vld [vmem:[%s9 + $0x1a8] sm:$0xf]
    %v991 = vld [vmem:[%s9 + $0x1ac] sm:$0xf]
    %v992 = vld [vmem:[%s9 + $0x1b0] sm:$0xf]
    %v993 = vld [vmem:[%s9 + $0x1b4] sm:$0xf]
    %v994 = vld [vmem:[%s9 + $0x1b8] sm:$0xf]
    %v995 = vld [vmem:[%s9 + $0x1bc] sm:$0xf]
    %v996 = vld [vmem:[%s9 + $0x1c0] sm:$0xf]
    %v997 = vld [vmem:[%s9 + $0x1c4] sm:$0xf]
    %v998 = vld [vmem:[%s9 + $0x1c8] sm:$0xf]
    %v999 = vld [vmem:[%s9 + $0x1cc] sm:$0xf]
    %v1000 = vld [vmem:[%s9 + $0x1d0] sm:$0xf]
    %v1001 = vld [vmem:[%s9 + $0x1d4] sm:$0xf]
    %v1002 = vld [vmem:[%s9 + $0x1d8] sm:$0xf]
    %v1003 = vld [vmem:[%s9 + $0x1dc] sm:$0xf]
    %v1004 = vld [vmem:[%s9 + $0x1e0] sm:$0xf]
    %v1005 = vld [vmem:[%s9 + $0x1e4] sm:$0xf]
    %v1006 = vld [vmem:[%s9 + $0x1e8] sm:$0xf]
    %v1007 = vld [vmem:[%s9 + $0x1ec] sm:$0xf]
    %v1008 = vld [vmem:[%s9 + $0x1f0] sm:$0xf]
    %v1009 = vld [vmem:[%s10] sm:$0x1]
    %v1011 = vlaneseq
    %v1012 = vshrl.u32 %v1011, 7
    %v1013 = vsub.s32 0, %v1012
    %v1014 = vrot.slane %v1009, %v1013
    %v1020 = vunpack.c.l.b16 %v880
    %v1021 = vunpack.c.h.b16 %v880
    %v1022 = vunpack.c.l.b16 %v881
    %v1023 = vunpack.c.h.b16 %v881
    %v1024 = vunpack.c.l.b16 %v882
    %v1025 = vunpack.c.h.b16 %v882
    %v1026 = vunpack.c.l.b16 %v883
    %v1027 = vunpack.c.h.b16 %v883
    %v1028 = vpack.c.b16 %v1020, %v1020
    %v1029 = vpack.c.b16 %v1021, %v1021
    %v1030 = vpack.c.b16 %v1022, %v1022
    %v1031 = vpack.c.b16 %v1023, %v1023
    %v1032 = vpack.c.b16 %v1024, %v1024
    %v1033 = vpack.c.b16 %v1025, %v1025
    %v1034 = vpack.c.b16 %v1026, %v1026
    %v1035 = vpack.c.b16 %v1027, %v1027
    %v1168 = vunpack.c.l.b16 %v884
    %v1169 = vunpack.c.l.b16 %v885
    %v1170 = vunpack.c.l.b16 %v886
    %v1171 = vunpack.c.l.b16 %v887
    %v1172 = vunpack.c.l.b16 %v888
    %v1173 = vunpack.c.l.b16 %v889
    %v1174 = vunpack.c.l.b16 %v890
    %v1175 = vunpack.c.l.b16 %v891
    %v1176 = vunpack.c.l.b16 %v892
    %v1177 = vunpack.c.l.b16 %v893
    %v1178 = vunpack.c.l.b16 %v894
    %v1179 = vunpack.c.l.b16 %v895
    %v1180 = vunpack.c.l.b16 %v896
    %v1181 = vunpack.c.l.b16 %v897
    %v1182 = vunpack.c.l.b16 %v898
    %v1183 = vunpack.c.l.b16 %v899
    %v1184 = vunpack.c.l.b16 %v900
    %v1185 = vunpack.c.l.b16 %v901
    %v1186 = vunpack.c.l.b16 %v902
    %v1187 = vunpack.c.l.b16 %v903
    %v1188 = vunpack.c.l.b16 %v904
    %v1189 = vunpack.c.l.b16 %v905
    %v1190 = vunpack.c.l.b16 %v906
    %v1191 = vunpack.c.l.b16 %v907
    %v1192 = vunpack.c.l.b16 %v908
    %v1193 = vunpack.c.l.b16 %v909
    %v1194 = vunpack.c.l.b16 %v910
    %v1195 = vunpack.c.l.b16 %v911
    %v1196 = vunpack.c.l.b16 %v912
    %v1197 = vunpack.c.l.b16 %v913
    %v1198 = vunpack.c.l.b16 %v914
    %v1199 = vunpack.c.l.b16 %v915
    %v1200 = vunpack.c.l.b16 %v916
    %v1201 = vunpack.c.l.b16 %v917
    %v1202 = vunpack.c.l.b16 %v918
    %v1203 = vunpack.c.l.b16 %v919
    %v1204 = vunpack.c.l.b16 %v920
    %v1205 = vunpack.c.l.b16 %v921
    %v1206 = vunpack.c.l.b16 %v922
    %v1207 = vunpack.c.l.b16 %v923
    %v1208 = vunpack.c.l.b16 %v924
    %v1209 = vunpack.c.l.b16 %v925
    %v1210 = vunpack.c.l.b16 %v926
    %v1211 = vunpack.c.l.b16 %v927
    %v1212 = vunpack.c.l.b16 %v928
    %v1213 = vunpack.c.l.b16 %v929
    %v1214 = vunpack.c.l.b16 %v930
    %v1215 = vunpack.c.l.b16 %v931
    %v1216 = vunpack.c.l.b16 %v932
    %v1217 = vunpack.c.l.b16 %v933
    %v1218 = vunpack.c.l.b16 %v934
    %v1219 = vunpack.c.l.b16 %v935
    %v1220 = vunpack.c.l.b16 %v936
    %v1221 = vunpack.c.l.b16 %v937
    %v1222 = vunpack.c.l.b16 %v938
    %v1223 = vunpack.c.l.b16 %v939
    %v1224 = vunpack.c.l.b16 %v940
    %v1225 = vunpack.c.l.b16 %v941
    %v1226 = vunpack.c.l.b16 %v942
    %v1227 = vunpack.c.l.b16 %v943
    %v1228 = vunpack.c.l.b16 %v944
    %v1229 = vunpack.c.l.b16 %v945
    %v1230 = vunpack.c.l.b16 %v946
    %v1231 = vunpack.c.l.b16 %v947
    %v1232 = vunpack.c.l.b16 %v948
    %v1233 = vunpack.c.l.b16 %v949
    %v1234 = vunpack.c.l.b16 %v950
    %v1235 = vunpack.c.l.b16 %v951
    %v1236 = vunpack.c.l.b16 %v952
    %v1237 = vunpack.c.l.b16 %v953
    %v1238 = vunpack.c.l.b16 %v954
    %v1239 = vunpack.c.l.b16 %v955
    %v1240 = vunpack.c.l.b16 %v956
    %v1241 = vunpack.c.l.b16 %v957
    %v1242 = vunpack.c.l.b16 %v958
    %v1243 = vunpack.c.l.b16 %v959
    %v1244 = vunpack.c.l.b16 %v960
    %v1245 = vunpack.c.l.b16 %v961
    %v1246 = vunpack.c.l.b16 %v962
    %v1247 = vunpack.c.l.b16 %v963
    %v1248 = vunpack.c.l.b16 %v964
    %v1249 = vunpack.c.l.b16 %v965
    %v1250 = vunpack.c.l.b16 %v966
    %v1251 = vunpack.c.l.b16 %v967
    %v1252 = vunpack.c.l.b16 %v968
    %v1253 = vunpack.c.l.b16 %v969
    %v1254 = vunpack.c.l.b16 %v970
    %v1255 = vunpack.c.l.b16 %v971
    %v1256 = vunpack.c.l.b16 %v972
    %v1257 = vunpack.c.l.b16 %v973
    %v1258 = vunpack.c.l.b16 %v974
    %v1259 = vunpack.c.l.b16 %v975
    %v1260 = vunpack.c.l.b16 %v976
    %v1261 = vunpack.c.l.b16 %v977
    %v1262 = vunpack.c.l.b16 %v978
    %v1263 = vunpack.c.l.b16 %v979
    %v1264 = vunpack.c.l.b16 %v980
    %v1265 = vunpack.c.l.b16 %v981
    %v1266 = vunpack.c.l.b16 %v982
    %v1267 = vunpack.c.l.b16 %v983
    %v1268 = vunpack.c.l.b16 %v984
    %v1269 = vunpack.c.l.b16 %v985
    %v1270 = vunpack.c.l.b16 %v986
    %v1271 = vunpack.c.l.b16 %v987
    %v1272 = vunpack.c.l.b16 %v988
    %v1273 = vunpack.c.l.b16 %v989
    %v1274 = vunpack.c.l.b16 %v990
    %v1275 = vunpack.c.l.b16 %v991
    %v1276 = vunpack.c.l.b16 %v992
    %v1277 = vunpack.c.l.b16 %v993
    %v1278 = vunpack.c.l.b16 %v994
    %v1279 = vunpack.c.l.b16 %v995
    %v1280 = vunpack.c.l.b16 %v996
    %v1281 = vunpack.c.l.b16 %v997
    %v1282 = vunpack.c.l.b16 %v998
    %v1283 = vunpack.c.l.b16 %v999
    %v1284 = vunpack.c.l.b16 %v1000
    %v1285 = vunpack.c.l.b16 %v1001
    %v1286 = vunpack.c.l.b16 %v1002
    %v1287 = vunpack.c.l.b16 %v1003
    %v1288 = vunpack.c.l.b16 %v1004
    %v1289 = vunpack.c.l.b16 %v1005
    %v1290 = vunpack.c.l.b16 %v1006
    %v1291 = vunpack.c.l.b16 %v1007
    %v1292 = vunpack.c.l.b16 %v1008
    %v1293 = vpack.c.b16 %v1169, %v1168
    %v1294 = vpack.c.b16 %v1171, %v1170
    %v1295 = vpack.c.b16 %v1173, %v1172
    %v1296 = vpack.c.b16 %v1175, %v1174
    %v1297 = vpack.c.b16 %v1177, %v1176
    %v1298 = vpack.c.b16 %v1179, %v1178
    %v1299 = vpack.c.b16 %v1181, %v1180
    %v1300 = vpack.c.b16 %v1183, %v1182
    %v1301 = vpack.c.b16 %v1185, %v1184
    %v1302 = vpack.c.b16 %v1187, %v1186
    %v1303 = vpack.c.b16 %v1189, %v1188
    %v1304 = vpack.c.b16 %v1191, %v1190
    %v1305 = vpack.c.b16 %v1193, %v1192
    %v1306 = vpack.c.b16 %v1195, %v1194
    %v1307 = vpack.c.b16 %v1197, %v1196
    %v1308 = vpack.c.b16 %v1199, %v1198
    %v1309 = vpack.c.b16 %v1201, %v1200
    %v1310 = vpack.c.b16 %v1203, %v1202
    %v1311 = vpack.c.b16 %v1205, %v1204
    %v1312 = vpack.c.b16 %v1207, %v1206
    %v1313 = vpack.c.b16 %v1209, %v1208
    %v1314 = vpack.c.b16 %v1211, %v1210
    %v1315 = vpack.c.b16 %v1213, %v1212
    %v1316 = vpack.c.b16 %v1215, %v1214
    %v1317 = vpack.c.b16 %v1217, %v1216
    %v1318 = vpack.c.b16 %v1219, %v1218
    %v1319 = vpack.c.b16 %v1221, %v1220
    %v1320 = vpack.c.b16 %v1223, %v1222
    %v1321 = vpack.c.b16 %v1225, %v1224
    %v1322 = vpack.c.b16 %v1227, %v1226
    %v1323 = vpack.c.b16 %v1229, %v1228
    %v1324 = vpack.c.b16 %v1231, %v1230
    %v1325 = vpack.c.b16 %v1233, %v1232
    %v1326 = vpack.c.b16 %v1235, %v1234
    %v1327 = vpack.c.b16 %v1237, %v1236
    %v1328 = vpack.c.b16 %v1239, %v1238
    %v1329 = vpack.c.b16 %v1241, %v1240
    %v1330 = vpack.c.b16 %v1243, %v1242
    %v1331 = vpack.c.b16 %v1245, %v1244
    %v1332 = vpack.c.b16 %v1247, %v1246
    %v1333 = vpack.c.b16 %v1249, %v1248
    %v1334 = vpack.c.b16 %v1251, %v1250
    %v1335 = vpack.c.b16 %v1253, %v1252
    %v1336 = vpack.c.b16 %v1255, %v1254
    %v1337 = vpack.c.b16 %v1257, %v1256
    %v1338 = vpack.c.b16 %v1259, %v1258
    %v1339 = vpack.c.b16 %v1261, %v1260
    %v1340 = vpack.c.b16 %v1263, %v1262
    %v1341 = vpack.c.b16 %v1265, %v1264
    %v1342 = vpack.c.b16 %v1267, %v1266
    %v1343 = vpack.c.b16 %v1269, %v1268
    %v1344 = vpack.c.b16 %v1271, %v1270
    %v1345 = vpack.c.b16 %v1273, %v1272
    %v1346 = vpack.c.b16 %v1275, %v1274
    %v1347 = vpack.c.b16 %v1277, %v1276
    %v1348 = vpack.c.b16 %v1279, %v1278
    %v1349 = vpack.c.b16 %v1281, %v1280
    %v1350 = vpack.c.b16 %v1283, %v1282
    %v1351 = vpack.c.b16 %v1285, %v1284
    %v1352 = vpack.c.b16 %v1287, %v1286
    %v1353 = vpack.c.b16 %v1289, %v1288
    %v1354 = vpack.c.b16 %v1291, %v1290
    %v1355 = vpack.c.b16 %v1292, %v1292
    %vm1418 = vcmask 850944
    %v1420 = vsel %vm1418, %v1035, 0
    %v1423 = vsel %vm222, %v1355, 0
    %1425 = vmatprep.subr.bf16.mxu0 0
    %1426 = vmatpush1.bf16.msra.mxu0 %v1300
    %1427 = vmatprep.subr.bf16.mxu0 0
    %1428 = vmatpush1.bf16.msra.mxu0 %v1299
    %1429 = vmatprep.subr.bf16.mxu0 0
    %1430 = vmatpush1.bf16.msra.mxu0 %v1298
    %1431 = vmatprep.subr.bf16.mxu0 0
    %1432 = vmatpush1.bf16.msra.mxu0 %v1297
    %1433 = vmatprep.subr.bf16.mxu0 0
    %1434 = vmatpush1.bf16.msra.mxu0 %v1296
    %1435 = vmatprep.subr.bf16.mxu0 0
    %1436 = vmatpush1.bf16.msra.mxu0 %v1295
    %1437 = vmatprep.subr.bf16.mxu0 0
    %1438 = vmatpush1.bf16.msra.mxu0 %v1294
    %1439 = vmatprep.subr.bf16.mxu0 0
    %1440 = vmatpush1.bf16.msra.mxu0 %v1293
    %1441 = vmatprep.subr.bf16.mxu0 0
    %1442 = vmatpush2.bf16.msra.mxu0 %v1308
    %1443 = vmatprep.subr.bf16.mxu0 0
    %1444 = vmatpush2.bf16.msra.mxu0 %v1307
    %1445 = vmatprep.subr.bf16.mxu0 0
    %1446 = vmatpush2.bf16.msra.mxu0 %v1306
    %1447 = vmatprep.subr.bf16.mxu0 0
    %1448 = vmatpush2.bf16.msra.mxu0 %v1305
    %1449 = vmatprep.subr.bf16.mxu0 0
    %1450 = vmatpush2.bf16.msra.mxu0 %v1304
    %1451 = vmatprep.subr.bf16.mxu0 0
    %1452 = vmatpush2.bf16.msra.mxu0 %v1303
    %1453 = vmatprep.subr.bf16.mxu0 0
    %1454 = vmatpush2.bf16.msra.mxu0 %v1302
    %1455 = vmatprep.subr.bf16.mxu0 0
    %1456 = vmatpush2.bf16.msra.mxu0 %v1301
    %1457 = vmatprep.mubr.bf16.mxu0 %v1029
    %1458 = vmatmul.mubr.bf16.gmra.mxu0 %v1028
    %v1459 = vpop.f32.mrf.mxu0
    %v1460 = vadd.f32 %v1014, %v1459
    %v1461 = vpop.f32.mrf.mxu0
    %v1462 = vpop.f32.mrf.mxu0
    %v1463 = vpop.f32.mrf.mxu0
    %1464 = vdwg.mxu0
    %1465 = vmatprep.subr.bf16.mxu0 0
    %1466 = vmatpush1.bf16.msra.mxu0 %v1316
    %1467 = vmatprep.subr.bf16.mxu0 0
    %1468 = vmatpush1.bf16.msra.mxu0 %v1315
    %1469 = vmatprep.subr.bf16.mxu0 0
    %1470 = vmatpush1.bf16.msra.mxu0 %v1314
    %1471 = vmatprep.subr.bf16.mxu0 0
    %1472 = vmatpush1.bf16.msra.mxu0 %v1313
    %1473 = vmatprep.subr.bf16.mxu0 0
    %1474 = vmatpush1.bf16.msra.mxu0 %v1312
    %1475 = vmatprep.subr.bf16.mxu0 0
    %1476 = vmatpush1.bf16.msra.mxu0 %v1311
    %1477 = vmatprep.subr.bf16.mxu0 0
    %1478 = vmatpush1.bf16.msra.mxu0 %v1310
    %1479 = vmatprep.subr.bf16.mxu0 0
    %1480 = vmatpush1.bf16.msra.mxu0 %v1309
    %1481 = vmatprep.subr.bf16.mxu0 0
    %1482 = vmatpush2.bf16.msra.mxu0 %v1324
    %1483 = vmatprep.subr.bf16.mxu0 0
    %1484 = vmatpush2.bf16.msra.mxu0 %v1323
    %1485 = vmatprep.subr.bf16.mxu0 0
    %1486 = vmatpush2.bf16.msra.mxu0 %v1322
    %1487 = vmatprep.subr.bf16.mxu0 0
    %1488 = vmatpush2.bf16.msra.mxu0 %v1321
    %1489 = vmatprep.subr.bf16.mxu0 0
    %1490 = vmatpush2.bf16.msra.mxu0 %v1320
    %1491 = vmatprep.subr.bf16.mxu0 0
    %1492 = vmatpush2.bf16.msra.mxu0 %v1319
    %1493 = vmatprep.subr.bf16.mxu0 0
    %1494 = vmatpush2.bf16.msra.mxu0 %v1318
    %1495 = vmatprep.subr.bf16.mxu0 0
    %1496 = vmatpush2.bf16.msra.mxu0 %v1317
    %1497 = vmatprep.mubr.bf16.mxu0 %v1031
    %1498 = vmatmul.mubr.bf16.gmra.mxu0 %v1030
    %v1499 = vpop.f32.mrf.mxu0
    %v1500 = vadd.f32 %v1460, %v1499
    %v1501 = vpop.f32.mrf.mxu0
    %v1502 = vpop.f32.mrf.mxu0
    %v1503 = vpop.f32.mrf.mxu0
    %1504 = vdwg.mxu0
    %1505 = vmatprep.subr.bf16.mxu0 0
    %1506 = vmatpush1.bf16.msra.mxu0 %v1332
    %1507 = vmatprep.subr.bf16.mxu0 0
    %1508 = vmatpush1.bf16.msra.mxu0 %v1331
    %1509 = vmatprep.subr.bf16.mxu0 0
    %1510 = vmatpush1.bf16.msra.mxu0 %v1330
    %1511 = vmatprep.subr.bf16.mxu0 0
    %1512 = vmatpush1.bf16.msra.mxu0 %v1329
    %1513 = vmatprep.subr.bf16.mxu0 0
    %1514 = vmatpush1.bf16.msra.mxu0 %v1328
    %1515 = vmatprep.subr.bf16.mxu0 0
    %1516 = vmatpush1.bf16.msra.mxu0 %v1327
    %1517 = vmatprep.subr.bf16.mxu0 0
    %1518 = vmatpush1.bf16.msra.mxu0 %v1326
    %1519 = vmatprep.subr.bf16.mxu0 0
    %1520 = vmatpush1.bf16.msra.mxu0 %v1325
    %1521 = vmatprep.subr.bf16.mxu0 0
    %1522 = vmatpush2.bf16.msra.mxu0 %v1340
    %1523 = vmatprep.subr.bf16.mxu0 0
    %1524 = vmatpush2.bf16.msra.mxu0 %v1339
    %1525 = vmatprep.subr.bf16.mxu0 0
    %1526 = vmatpush2.bf16.msra.mxu0 %v1338
    %1527 = vmatprep.subr.bf16.mxu0 0
    %1528 = vmatpush2.bf16.msra.mxu0 %v1337
    %1529 = vmatprep.subr.bf16.mxu0 0
    %1530 = vmatpush2.bf16.msra.mxu0 %v1336
    %1531 = vmatprep.subr.bf16.mxu0 0
    %1532 = vmatpush2.bf16.msra.mxu0 %v1335
    %1533 = vmatprep.subr.bf16.mxu0 0
    %1534 = vmatpush2.bf16.msra.mxu0 %v1334
    %1535 = vmatprep.subr.bf16.mxu0 0
    %1536 = vmatpush2.bf16.msra.mxu0 %v1333
    %1537 = vmatprep.mubr.bf16.mxu0 %v1033
    %1538 = vmatmul.mubr.bf16.gmra.mxu0 %v1032
    %v1539 = vpop.f32.mrf.mxu0
    %v1540 = vadd.f32 %v1500, %v1539
    %v1541 = vpop.f32.mrf.mxu0
    %v1542 = vpop.f32.mrf.mxu0
    %v1543 = vpop.f32.mrf.mxu0
    %1544 = vdwg.mxu0
    %1545 = vmatprep.subr.bf16.mxu0 0
    %1546 = vmatpush1.bf16.msra.mxu0 %v1348
    %1547 = vmatprep.subr.bf16.mxu0 0
    %1548 = vmatpush1.bf16.msra.mxu0 %v1347
    %1549 = vmatprep.subr.bf16.mxu0 0
    %1550 = vmatpush1.bf16.msra.mxu0 %v1346
    %1551 = vmatprep.subr.bf16.mxu0 0
    %1552 = vmatpush1.bf16.msra.mxu0 %v1345
    %1553 = vmatprep.subr.bf16.mxu0 0
    %1554 = vmatpush1.bf16.msra.mxu0 %v1344
    %1555 = vmatprep.subr.bf16.mxu0 0
    %1556 = vmatpush1.bf16.msra.mxu0 %v1343
    %1557 = vmatprep.subr.bf16.mxu0 0
    %1558 = vmatpush1.bf16.msra.mxu0 %v1342
    %1559 = vmatprep.subr.bf16.mxu0 0
    %1560 = vmatpush1.bf16.msra.mxu0 %v1341
    %1561 = vmatprep.subr.bf16.mxu0 0
    %1562 = vmatpush2.bf16.msra.mxu0 0
    %1563 = vmatprep.subr.bf16.mxu0 0
    %1564 = vmatpush2.bf16.msra.mxu0 %v1423
    %1565 = vmatprep.subr.bf16.mxu0 0
    %1566 = vmatpush2.bf16.msra.mxu0 %v1354
    %1567 = vmatprep.subr.bf16.mxu0 0
    %1568 = vmatpush2.bf16.msra.mxu0 %v1353
    %1569 = vmatprep.subr.bf16.mxu0 0
    %1570 = vmatpush2.bf16.msra.mxu0 %v1352
    %1571 = vmatprep.subr.bf16.mxu0 0
    %1572 = vmatpush2.bf16.msra.mxu0 %v1351
    %1573 = vmatprep.subr.bf16.mxu0 0
    %1574 = vmatpush2.bf16.msra.mxu0 %v1350
    %1575 = vmatprep.subr.bf16.mxu0 0
    %1576 = vmatpush2.bf16.msra.mxu0 %v1349
    %1577 = vmatprep.mubr.bf16.mxu0 %v1420
    %1578 = vmatmul.mubr.bf16.gmra.mxu0 %v1034
    %v1579 = vpop.f32.mrf.mxu0
    %v1580 = vadd.f32 %v1540, %v1579
    %v1581 = vpop.f32.mrf.mxu0
    %v1582 = vpop.f32.mrf.mxu0
    %v1583 = vpop.f32.mrf.mxu0
    %1584 = vdwg.mxu0
    %v1585 = vld [vmem:[%s0] sm:$0xf]
    %vm1586 = vcmask 781312
    %1587 = vst.msk [vmem:[#allocation2] sm:$0xf] %vm1586, %v1585
    %v1588 = vpack.c.bf16 %v1580, %v1580
    %v1590 = vunpack.c.l.b16 %v1588
    %v1591 = vpack.c.b16 %v1590, %v1590
    %1592 = vrot.lane.b32.xlu0 %v1591, 96
    %v1593 = vpop.permute.xlu0 %1592
    %vm1595 = vcmask 1044224
    %1596 = vst.msk [vmem:[#allocation2] sm:$0xf] %vm1595, %v1593
    %v1597 = vpack.c.bf16 %v872, %v872
    %v1598 = vpack.c.bf16 %v873, %v873
    %v1599 = vpack.c.bf16 %v874, %v874
    %v1600 = vpack.c.bf16 %v875, %v875
    %v1601 = vpack.c.bf16 %v876, %v876
    %v1602 = vpack.c.bf16 %v877, %v877
    %v1603 = vpack.c.bf16 %v878, %v878
    %v1604 = vpack.c.bf16 %v879, %v879
    %v1613 = vunpack.c.l.b16 %v1597
    %v1614 = vunpack.c.l.b16 %v1598
    %v1615 = vunpack.c.l.b16 %v1599
    %v1616 = vunpack.c.l.b16 %v1600
    %v1617 = vunpack.c.l.b16 %v1601
    %v1618 = vunpack.c.l.b16 %v1602
    %v1619 = vunpack.c.l.b16 %v1603
    %v1620 = vunpack.c.l.b16 %v1604
    %v1621 = vpack.c.b16 %v1613, %v1613
    %v1622 = vpack.c.b16 %v1614, %v1614
    %v1623 = vpack.c.b16 %v1615, %v1615
    %v1624 = vpack.c.b16 %v1616, %v1616
    %v1625 = vpack.c.b16 %v1617, %v1617
    %v1626 = vpack.c.b16 %v1618, %v1618
    %v1627 = vpack.c.b16 %v1619, %v1619
    %v1628 = vpack.c.b16 %v1620, %v1620
    %v1629 = vunpack.c.l.b16 %v1621
    %v1630 = vunpack.c.l.b16 %v1622
    %v1631 = vunpack.c.l.b16 %v1623
    %v1632 = vunpack.c.l.b16 %v1624
    %v1633 = vunpack.c.l.b16 %v1625
    %v1634 = vunpack.c.l.b16 %v1626
    %v1635 = vunpack.c.l.b16 %v1627
    %v1636 = vunpack.c.l.b16 %v1628
    %v1637 = vrot.slane %v1630, 7
    %vm1638 = vcmask 1041409
    %v1639 = vsel %vm1638, %v1637, %v1629
    %v1640 = vrot.slane %v1631, 6
    %vm1641 = vcmask 1042434
    %v1642 = vsel %vm1641, %v1640, %v1639
    %v1643 = vrot.slane %v1632, 5
    %vm1644 = vcmask 1043459
    %v1645 = vsel %vm1644, %v1643, %v1642
    %v1646 = vrot.slane %v1633, 4
    %vm1647 = vcmask 1044484
    %v1648 = vsel %vm1647, %v1646, %v1645
    %v1649 = vrot.slane %v1634, 3
    %vm1650 = vcmask 1045509
    %v1651 = vsel %vm1650, %v1649, %v1648
    %v1652 = vrot.slane %v1635, 2
    %vm1653 = vcmask 1046534
    %v1654 = vsel %vm1653, %v1652, %v1651
    %v1655 = vrot.slane %v1636, 1
    %vm1656 = vcmask 1047559
    %v1657 = vsel %vm1656, %v1655, %v1654
    %v1658 = vpack.c.b16 %v1657, %v1657
    %vm1660 = vcmask 560128
    %1661 = vst.msk [vmem:[#allocation2 + $0x4] sm:$0xf] %vm1660, %v1658
    %vm1662 = vcmask 1044008
    %1663 = vst.msk [vmem:[#allocation2 + $0x4] sm:$0xf] %vm1662, 0
    %v1664 = vld [vmem:[#allocation2] sm:$0xff]
    %v1665 = vld [vmem:[%s11] sm:$0xff]
    %v1666 = vld [vmem:[%s11 + $0x8] sm:$0xff]
    %v1667 = vld [vmem:[%s11 + $0x10] sm:$0xff]
    %v1668 = vld [vmem:[%s11 + $0x18] sm:$0xff]
    %v1669 = vld [vmem:[%s11 + $0x20] sm:$0xff]
    %v1670 = vld [vmem:[%s11 + $0x28] sm:$0xff]
    %v1671 = vld [vmem:[%s11 + $0x30] sm:$0xff]
    %v1672 = vld [vmem:[%s11 + $0x38] sm:$0xff]
    %v1673 = vld [vmem:[%s11 + $0x40] sm:$0xff]
    %v1674 = vld [vmem:[%s11 + $0x48] sm:$0xff]
    %v1675 = vld [vmem:[%s11 + $0x50] sm:$0xff]
    %v1676 = vld [vmem:[%s11 + $0x58] sm:$0xff]
    %v1677 = vld [vmem:[%s11 + $0x60] sm:$0xff]
    %v1678 = vld [vmem:[%s11 + $0x68] sm:$0xff]
    %v1679 = vld [vmem:[%s11 + $0x70] sm:$0xff]
    %v1680 = vld [vmem:[%s11 + $0x78] sm:$0xff]
    %v1681 = vld [vmem:[%s11 + $0x80] sm:$0xff]
    %v1682 = vld [vmem:[%s11 + $0x88] sm:$0xff]
    %v1683 = vld [vmem:[%s11 + $0x90] sm:$0xff]
    %v1684 = vld [vmem:[%s11 + $0x98] sm:$0xff]
    %v1685 = vld [vmem:[%s11 + $0xa0] sm:$0xff]
    %v1686 = vld [vmem:[%s11 + $0xa8] sm:$0xff]
    %v1687 = vld [vmem:[%s11 + $0xb0] sm:$0xff]
    %v1688 = vld [vmem:[%s11 + $0xb8] sm:$0xff]
    %v1689 = vld [vmem:[%s11 + $0xc0] sm:$0xff]
    %v1690 = vld [vmem:[%s11 + $0xc8] sm:$0xff]
    %v1691 = vld [vmem:[%s11 + $0xd0] sm:$0xff]
    %v1692 = vld [vmem:[%s11 + $0xd8] sm:$0xff]
    %v1693 = vld [vmem:[%s11 + $0xe0] sm:$0xff]
    %v1694 = vld [vmem:[%s11 + $0xe8] sm:$0xff]
    %v1695 = vld [vmem:[%s11 + $0xf0] sm:$0xff]
    %v1696 = vld [vmem:[%s11 + $0xf8] sm:$0xff]
    %v1697 = vld [vmem:[%s12] sm:$0x3]
    %v1699 = vlaneseq
    %v1700 = vshrl.u32 %v1699, 7
    %v1701 = vsub.s32 0, %v1700
    %v1702 = vrot.slane %v1697, %v1701
    %v1703 = vlaneseq
    %v1704 = vshrl.u32 %v1703, 7
    %v1705 = vsub.s32 1, %v1704
    %v1706 = vrot.slane %v1697, %v1705
    %v1710 = vunpack.c.l.b16 %v1664
    %v1711 = vunpack.c.h.b16 %v1664
    %v1712 = vpack.c.b16 %v1710, %v1710
    %v1713 = vpack.c.b16 %v1711, %v1711
    %v1748 = vunpack.c.l.b16 %v1665
    %v1749 = vunpack.c.h.b16 %v1665
    %v1750 = vunpack.c.l.b16 %v1666
    %v1751 = vunpack.c.h.b16 %v1666
    %v1752 = vunpack.c.l.b16 %v1667
    %v1753 = vunpack.c.h.b16 %v1667
    %v1754 = vunpack.c.l.b16 %v1668
    %v1755 = vunpack.c.h.b16 %v1668
    %v1756 = vunpack.c.l.b16 %v1669
    %v1757 = vunpack.c.h.b16 %v1669
    %v1758 = vunpack.c.l.b16 %v1670
    %v1759 = vunpack.c.h.b16 %v1670
    %v1760 = vunpack.c.l.b16 %v1671
    %v1761 = vunpack.c.h.b16 %v1671
    %v1762 = vunpack.c.l.b16 %v1672
    %v1763 = vunpack.c.h.b16 %v1672
    %v1764 = vunpack.c.l.b16 %v1673
    %v1765 = vunpack.c.h.b16 %v1673
    %v1766 = vunpack.c.l.b16 %v1674
    %v1767 = vunpack.c.h.b16 %v1674
    %v1768 = vunpack.c.l.b16 %v1675
    %v1769 = vunpack.c.h.b16 %v1675
    %v1770 = vunpack.c.l.b16 %v1676
    %v1771 = vunpack.c.h.b16 %v1676
    %v1772 = vunpack.c.l.b16 %v1677
    %v1773 = vunpack.c.h.b16 %v1677
    %v1774 = vunpack.c.l.b16 %v1678
    %v1775 = vunpack.c.h.b16 %v1678
    %v1776 = vunpack.c.l.b16 %v1679
    %v1777 = vunpack.c.h.b16 %v1679
    %v1778 = vunpack.c.l.b16 %v1680
    %v1779 = vunpack.c.h.b16 %v1680
    %v1780 = vunpack.c.l.b16 %v1681
    %v1781 = vunpack.c.h.b16 %v1681
    %v1782 = vunpack.c.l.b16 %v1682
    %v1783 = vunpack.c.h.b16 %v1682
    %v1784 = vunpack.c.l.b16 %v1683
    %v1785 = vunpack.c.h.b16 %v1683
    %v1786 = vunpack.c.l.b16 %v1684
    %v1787 = vunpack.c.h.b16 %v1684
    %v1788 = vunpack.c.l.b16 %v1685
    %v1789 = vunpack.c.h.b16 %v1685
    %v1790 = vunpack.c.l.b16 %v1686
    %v1791 = vunpack.c.h.b16 %v1686
    %v1792 = vunpack.c.l.b16 %v1687
    %v1793 = vunpack.c.h.b16 %v1687
    %v1794 = vunpack.c.l.b16 %v1688
    %v1795 = vunpack.c.h.b16 %v1688
    %v1796 = vunpack.c.l.b16 %v1689
    %v1797 = vunpack.c.h.b16 %v1689
    %v1798 = vunpack.c.l.b16 %v1690
    %v1799 = vunpack.c.h.b16 %v1690
    %v1800 = vunpack.c.l.b16 %v1691
    %v1801 = vunpack.c.h.b16 %v1691
    %v1802 = vunpack.c.l.b16 %v1692
    %v1803 = vunpack.c.h.b16 %v1692
    %v1804 = vunpack.c.l.b16 %v1693
    %v1805 = vunpack.c.h.b16 %v1693
    %v1806 = vunpack.c.l.b16 %v1694
    %v1807 = vunpack.c.h.b16 %v1694
    %v1808 = vunpack.c.l.b16 %v1695
    %v1809 = vunpack.c.h.b16 %v1695
    %v1810 = vunpack.c.l.b16 %v1696
    %v1811 = vunpack.c.h.b16 %v1696
    %v1812 = vpack.c.b16 %v1750, %v1748
    %v1813 = vpack.c.b16 %v1751, %v1749
    %v1814 = vpack.c.b16 %v1754, %v1752
    %v1815 = vpack.c.b16 %v1755, %v1753
    %v1816 = vpack.c.b16 %v1758, %v1756
    %v1817 = vpack.c.b16 %v1759, %v1757
    %v1818 = vpack.c.b16 %v1762, %v1760
    %v1819 = vpack.c.b16 %v1763, %v1761
    %v1820 = vpack.c.b16 %v1766, %v1764
    %v1821 = vpack.c.b16 %v1767, %v1765
    %v1822 = vpack.c.b16 %v1770, %v1768
    %v1823 = vpack.c.b16 %v1771, %v1769
    %v1824 = vpack.c.b16 %v1774, %v1772
    %v1825 = vpack.c.b16 %v1775, %v1773
    %v1826 = vpack.c.b16 %v1778, %v1776
    %v1827 = vpack.c.b16 %v1779, %v1777
    %v1828 = vpack.c.b16 %v1782, %v1780
    %v1829 = vpack.c.b16 %v1783, %v1781
    %v1830 = vpack.c.b16 %v1786, %v1784
    %v1831 = vpack.c.b16 %v1787, %v1785
    %v1832 = vpack.c.b16 %v1790, %v1788
    %v1833 = vpack.c.b16 %v1791, %v1789
    %v1834 = vpack.c.b16 %v1794, %v1792
    %v1835 = vpack.c.b16 %v1795, %v1793
    %v1836 = vpack.c.b16 %v1798, %v1796
    %v1837 = vpack.c.b16 %v1799, %v1797
    %v1838 = vpack.c.b16 %v1802, %v1800
    %v1839 = vpack.c.b16 %v1803, %v1801
    %v1840 = vpack.c.b16 %v1806, %v1804
    %v1841 = vpack.c.b16 %v1807, %v1805
    %v1842 = vpack.c.b16 %v1810, %v1808
    %v1843 = vpack.c.b16 %v1811, %v1809
    %1876 = vmatprep.subr.bf16.mxu0 %v1827
    %1877 = vmatpush1.bf16.msra.mxu0 %v1826
    %1878 = vmatprep.subr.bf16.mxu0 %v1825
    %1879 = vmatpush1.bf16.msra.mxu0 %v1824
    %1880 = vmatprep.subr.bf16.mxu0 %v1823
    %1881 = vmatpush1.bf16.msra.mxu0 %v1822
    %1882 = vmatprep.subr.bf16.mxu0 %v1821
    %1883 = vmatpush1.bf16.msra.mxu0 %v1820
    %1884 = vmatprep.subr.bf16.mxu0 %v1819
    %1885 = vmatpush1.bf16.msra.mxu0 %v1818
    %1886 = vmatprep.subr.bf16.mxu0 %v1817
    %1887 = vmatpush1.bf16.msra.mxu0 %v1816
    %1888 = vmatprep.subr.bf16.mxu0 %v1815
    %1889 = vmatpush1.bf16.msra.mxu0 %v1814
    %1890 = vmatprep.subr.bf16.mxu0 %v1813
    %1891 = vmatpush1.bf16.msra.mxu0 %v1812
    %1892 = vmatprep.subr.bf16.mxu0 %v1843
    %1893 = vmatpush2.bf16.msra.mxu0 %v1842
    %1894 = vmatprep.subr.bf16.mxu0 %v1841
    %1895 = vmatpush2.bf16.msra.mxu0 %v1840
    %1896 = vmatprep.subr.bf16.mxu0 %v1839
    %1897 = vmatpush2.bf16.msra.mxu0 %v1838
    %1898 = vmatprep.subr.bf16.mxu0 %v1837
    %1899 = vmatpush2.bf16.msra.mxu0 %v1836
    %1900 = vmatprep.subr.bf16.mxu0 %v1835
    %1901 = vmatpush2.bf16.msra.mxu0 %v1834
    %1902 = vmatprep.subr.bf16.mxu0 %v1833
    %1903 = vmatpush2.bf16.msra.mxu0 %v1832
    %1904 = vmatprep.subr.bf16.mxu0 %v1831
    %1905 = vmatpush2.bf16.msra.mxu0 %v1830
    %1906 = vmatprep.subr.bf16.mxu0 %v1829
    %1907 = vmatpush2.bf16.msra.mxu0 %v1828
    %1908 = vmatprep.mubr.bf16.mxu0 %v1713
    %1909 = vmatmul.mubr.bf16.gmra.mxu0 %v1712
    %v1910 = vpop.f32.mrf.mxu0
    %v1911 = vadd.f32 %v1702, %v1910
    %v1912 = vpop.f32.mrf.mxu0
    %v1913 = vadd.f32 %v1706, %v1912
    %v1914 = vpop.f32.mrf.mxu0
    %v1915 = vpop.f32.mrf.mxu0
    %1916 = vdwg.mxu0
    %vm1917 = vcmp.lt.f32.partialorder %v1911, 0.0
    %vm1918 = vcmp.lt.f32.partialorder %v1913, 0.0
    %v1919 = vmul.f32 %v1911, 0.01
    %v1920 = vmul.f32 %v1913, 0.01
    %v1921 = vsel %vm1917, %v1919, %v1911
    %v1922 = vsel %vm1918, %v1920, %v1913
    %1923 = vst [vmem:[#allocation3] sm:$0xff] %v1921
    %vm1924 = vcmask 564224
    %1925 = vst.msk [vmem:[#allocation3 + $0x8] sm:$0xff] %vm1924, %v1922
    // Predicated region
    $region54: #{feature_embed.1} parent=1 // pred_check
      _
    $region55: #{feature_embed.1} parent=1 // pred_check_branch
      %1927 = sbr.rel (0) target = $region57
    $region56: #{feature_embed.1} parent=1 // pred_region
      %s1929 = ssub.s32 256, 256
      %1930 = vsyncadd [#allocation4], %s1929
      %s1932 = sshll.u32 [#allocation3], 4
      %s1933 = int_to_ptr.vmem [resolvable:$true] %s1932
      %1935 = dma.vmem_to_hbm [thread:$0]  %s1933, 256, %s13, [#allocation4]
    $region57: #{feature_embed.1} parent=1 // pred_fallthru
      _
    // Predicated region
    $region58: #{feature_embed.1} parent=1 // pred_check
      _
    $region59: #{feature_embed.1} parent=1 // pred_check_branch
      %1937 = sbr.rel (0) target = $region61
    $region60: #{feature_embed.1} parent=1 // pred_region
      %1938 = dma.done [#allocation4], 256
    $region61: #{feature_embed.1} parent=1 // pred_fallthru
      _
    %1939 = vsyncpa [#allocation4], 1

</llo_original>
